<compile_context>
chip_gen: v6e
topology: v6e:2x2x1
jax: 0.10.0
libtpu: 0.0.40
codegen_flags: <defaults>
</compile_context>

<pallas_src>
import jax
import jax.numpy as jnp
import numpy as np
from jax.experimental import pallas as pl
from jax.experimental.pallas import tpu as pltpu

LANE = 128


def _ceil_to(n, m):
    return ((n + m - 1) // m) * m


# ---------------------------------------------------------------------------
# Kernel: T decode steps, weights resident in VMEM, hidden carried in scratch.
# ---------------------------------------------------------------------------
def gru_decode_kernel(tok_ref, h0_ref, emb_ref, w_ref, b_ref, fcw_ref, fcb_ref,
                      pred_ref, hout_ref, h_carry):
    """One grid step == one decoder forward (embedding -> L GRU layers -> fc_out).

    tok_ref  : (T, B) int32 token ids in SMEM (scalar prefetch)
    h0_ref   : (L, B, Hp) f32 initial hidden (padded lanes zero), loaded once
    emb_ref  : (Vp, Ep) bf16 embedding table (zero padded)
    w_ref    : (L, Ep+Hp, 4*Hp) bf16 fused GRU weights, gate tiles [r|z|n_in|n_hid]
    b_ref    : (L, 1, 4*Hp) f32 fused biases (r,z: b_ih+b_hh; n_in: b_ih; n_hid: b_hh)
    fcw_ref  : (Hp, Vp) bf16 fc_out weight (transposed, padded)
    fcb_ref  : (1, Vp) f32 fc_out bias (padded lanes = -1e9)
    pred_ref : (1, B, Vp) f32 logits block for step t
    hout_ref : (L, B, Hp) f32 final hidden (written on last step)
    h_carry  : (L, B, Hp) f32 VMEM scratch, persists across grid steps
    """
    t = pl.program_id(0)
    n_steps = pl.num_programs(0)
    L, B, Hp = h_carry.shape
    Vtab = emb_ref.shape[0]

    @pl.when(t == 0)
    def _():
        h_carry[...] = h0_ref[...]

    # Embedding lookup fused as a one-hot (B, Vp) @ (Vp, Ep) MXU matmul; token ids
    # are read as SMEM scalars (cheap scalar-broadcast compares on the VPU).
    row = jax.lax.broadcasted_iota(jnp.int32, (B, Vtab), 0)
    col = jax.lax.broadcasted_iota(jnp.int32, (B, Vtab), 1)
    onehot = jnp.zeros((B, Vtab), jnp.float32)
    for b in range(B):
        tok_b = tok_ref[t, b]
        onehot = jnp.where(jnp.logical_and(row == b, col == tok_b), 1.0, onehot)
    x = jnp.dot(onehot.astype(jnp.bfloat16), emb_ref[...],
                preferred_element_type=jnp.float32)                  # (B, Ep) f32

    # Stacked GRU layers: exactly one fused MXU call per layer.
    for l in range(L):
        h_prev = h_carry[l]                                          # (B, Hp) f32
        # Both halves are exact (8,128) lane tiles -> concat lowers to aligned copies.
        xh = jnp.concatenate([x, h_prev], axis=1)                    # (B, Ep+Hp)
        g = jnp.dot(xh.astype(jnp.bfloat16), w_ref[l],
                    preferred_element_type=jnp.float32) + b_ref[l]   # (B, 4*Hp)
        r = jax.nn.sigmoid(g[:, 0:Hp])                               # lane-aligned tiles
        z = jax.nn.sigmoid(g[:, Hp:2 * Hp])
        n = jnp.tanh(g[:, 2 * Hp:3 * Hp] + r * g[:, 3 * Hp:4 * Hp])
        h_new = (1.0 - z) * n + z * h_prev
        h_carry[l] = h_new
        x = h_new

    # Lane-dense vocab projection (padded bias lanes are -1e9 -> argmax-safe).
    pred_ref[0] = jnp.dot(x.astype(jnp.bfloat16), fcw_ref[...],
                          preferred_element_type=jnp.float32) + fcb_ref[...]

    @pl.when(t == n_steps - 1)
    def _():
        hout_ref[...] = h_carry[...]


# ---------------------------------------------------------------------------
# Parameter construction (raw torch-like params + padded/fused kernel params)
# ---------------------------------------------------------------------------
def make_params(key, output_size, embedding_dim, hidden_dim, num_layers):
    assert embedding_dim == hidden_dim, (
        "layer inputs are stacked with hidden states; keep embedding_dim == hidden_dim")
    V, E, H, L = output_size, embedding_dim, hidden_dim, num_layers
    ks = jax.random.split(key, 8)
    scale = 0.1
    return {
        "embedding": scale * jax.random.normal(ks[0], (V, E), jnp.float32),
        # torch layout is (L, 3H, in); stored transposed (L, in, 3H), gate order r|z|n
        "w_ih_t": scale * jax.random.normal(ks[1], (L, E, 3 * H), jnp.float32),
        "w_hh_t": scale * jax.random.normal(ks[2], (L, H, 3 * H), jnp.float32),
        "b_ih": scale * jax.random.normal(ks[3], (L, 1, 3 * H), jnp.float32),
        "b_hh": scale * jax.random.normal(ks[4], (L, 1, 3 * H), jnp.float32),
        # torch fc_out.weight is (V, H); stored transposed (H, V)
        "fc_w_t": scale * jax.random.normal(ks[5], (H, V), jnp.float32),
        "fc_b": scale * jax.random.normal(ks[6], (1, V), jnp.float32),
    }


def prepare_kernel_params(raw):
    """Pad to 128-lane tiles, fuse all four gate matmul paths into one weight."""
    V, E = raw["embedding"].shape
    L = raw["w_ih_t"].shape[0]
    H = raw["w_hh_t"].shape[1]
    Hp = max(LANE, _ceil_to(H, LANE))
    Ep = Hp
    Vp = max(LANE, _ceil_to(V, LANE))

    emb = np.zeros((Vp, Ep), np.float32)
    emb[:V, :E] = np.asarray(raw["embedding"])

    # Fused per-layer weight (Ep+Hp, 4*Hp), column tiles [r | z | n_in | n_hid]:
    #   rows [0:E]     : W_ih for r, z, n_in   (n_hid tile zero)
    #   rows [Ep:Ep+H] : W_hh for r, z, n_hid  (n_in tile zero)
    w_rzn = np.zeros((L, Ep + Hp, 4 * Hp), np.float32)
    b_rzn = np.zeros((L, 1, 4 * Hp), np.float32)

    w_ih_t = np.asarray(raw["w_ih_t"])
    w_hh_t = np.asarray(raw["w_hh_t"])
    b_ih = np.asarray(raw["b_ih"])
    b_hh = np.asarray(raw["b_hh"])

    for l in range(L):
        for g in range(3):                       # gate order r, z, n
            src = slice(g * H, (g + 1) * H)
            w_rzn[l, :E, g * Hp:g * Hp + H] = w_ih_t[l][:, src]
            if g < 2:                            # r, z: hidden path + both biases fused
                w_rzn[l, Ep:Ep + H, g * Hp:g * Hp + H] = w_hh_t[l][:, src]
                b_rzn[l, :, g * Hp:g * Hp + H] = b_ih[l][:, src] + b_hh[l][:, src]
            else:                                # n: input path in tile 2, hidden in tile 3
                b_rzn[l, :, g * Hp:g * Hp + H] = b_ih[l][:, src]
                w_rzn[l, Ep:Ep + H, 3 * Hp:3 * Hp + H] = w_hh_t[l][:, src]
                b_rzn[l, :, 3 * Hp:3 * Hp + H] = b_hh[l][:, src]

    fc_w = np.zeros((Hp, Vp), np.float32)
    fc_w[:H, :V] = np.asarray(raw["fc_w_t"])
    fc_b = np.full((1, Vp), -1e9, np.float32)    # padded vocab lanes can never win argmax
    fc_b[:, :V] = np.asarray(raw["fc_b"])

    kparams = {
        "embedding": jnp.asarray(emb, jnp.bfloat16),
        "w_rzn": jnp.asarray(w_rzn, jnp.bfloat16),
        "b_rzn": jnp.asarray(b_rzn, jnp.float32),
        "fc_w": jnp.asarray(fc_w, jnp.bfloat16),
        "fc_b": jnp.asarray(fc_b, jnp.float32),
    }
    dims = (V, E, H, Hp, Ep, Vp)
    return kparams, dims


def pad_hidden(hidden, Hp):
    """(L, B, H) -> (L, B, Hp) with zero-padded lanes (kept exactly zero by the kernel)."""
    L, B, H = hidden.shape
    return jnp.zeros((L, B, Hp), jnp.float32).at[:, :, :H].set(hidden)


# ---------------------------------------------------------------------------
# Wrapper: one pallas_call for the whole T-step decode, jitted.
# ---------------------------------------------------------------------------
def _decode_call(tokens, h0_p, emb, w_rzn, b_rzn, fc_w, fc_b):
    T, B = tokens.shape
    L, _, Hp = h0_p.shape
    Vtab, Ep = emb.shape
    Vp = fc_w.shape[1]

    flops = int(T * (2 * B * Vtab * Ep
                     + L * 2 * B * (Ep + Hp) * 4 * Hp
                     + 2 * B * Hp * Vp))
    transcendentals = int(T * L * B * 3 * Hp)
    bytes_accessed = int(4 * tokens.size + 8 * h0_p.size
                         + 2 * (emb.size + w_rzn.size + fc_w.size)
                         + 4 * (b_rzn.size + fc_b.size)
                         + 4 * T * B * Vp)

    grid_spec = pltpu.PrefetchScalarGridSpec(
        num_scalar_prefetch=1,                     # tokens -> SMEM, visible in-kernel
        grid=(T,),
        in_specs=[
            pl.BlockSpec((L, B, Hp), lambda t, tok: (0, 0, 0)),            # h0 (once)
            pl.BlockSpec((Vtab, Ep), lambda t, tok: (0, 0)),               # embedding
            pl.BlockSpec((L, Ep + Hp, 4 * Hp), lambda t, tok: (0, 0, 0)),  # fused GRU W
            pl.BlockSpec((L, 1, 4 * Hp), lambda t, tok: (0, 0, 0)),        # fused GRU b
            pl.BlockSpec((Hp, Vp), lambda t, tok: (0, 0)),                 # fc_w
            pl.BlockSpec((1, Vp), lambda t, tok: (0, 0)),                  # fc_b
        ],
        out_specs=[
            pl.BlockSpec((1, B, Vp), lambda t, tok: (t, 0, 0)),            # step-t logits
            pl.BlockSpec((L, B, Hp), lambda t, tok: (0, 0, 0)),            # final hidden
        ],
        scratch_shapes=[pltpu.VMEM((L, B, Hp), jnp.float32)],              # hidden carry
    )

    return pl.pallas_call(
        gru_decode_kernel,
        grid_spec=grid_spec,
        out_shape=(jax.ShapeDtypeStruct((T, B, Vp), jnp.float32),
                   jax.ShapeDtypeStruct((L, B, Hp), jnp.float32)),
        compiler_params=pltpu.CompilerParams(
            dimension_semantics=("arbitrary",)),     # sequential recurrence over t
        cost_estimate=pl.CostEstimate(flops=flops,
                                      transcendentals=transcendentals,
                                      bytes_accessed=bytes_accessed),
    )(tokens, h0_p, emb, w_rzn, b_rzn, fc_w, fc_b)


decoder_decode = jax.jit(_decode_call)


# ---------------------------------------------------------------------------
# Pure-JAX references (mirror torch Decoder.forward applied T times sequentially)
# ---------------------------------------------------------------------------
def decoder_decode_ref(raw, tokens, hidden, mirror_bf16=False):
    H = raw["w_hh_t"].shape[1]
    if mirror_bf16:
        emb = raw["embedding"].astype(jnp.bfloat16).astype(jnp.float32)
        w_ih_t = raw["w_ih_t"].astype(jnp.bfloat16)
        w_hh_t = raw["w_hh_t"].astype(jnp.bfloat16)
        fc_w_t = raw["fc_w_t"].astype(jnp.bfloat16)
    else:
        emb, w_ih_t, w_hh_t, fc_w_t = (raw["embedding"], raw["w_ih_t"],
                                       raw["w_hh_t"], raw["fc_w_t"])

    def dot(a, w):
        if mirror_bf16:
            return jnp.dot(a.astype(jnp.bfloat16), w, preferred_element_type=jnp.float32)
        return jnp.dot(a, w, preferred_element_type=jnp.float32)

    L = hidden.shape[0]
    preds = []
    for t in range(tokens.shape[0]):
        x = jnp.take(emb, tokens[t], axis=0)
        new_hidden = []
        for l in range(L):
            h = hidden[l]
            gi = dot(x, w_ih_t[l]) + raw["b_ih"][l]
            gh = dot(h, w_hh_t[l]) + raw["b_hh"][l]
            r = jax.nn.sigmoid(gi[:, :H] + gh[:, :H])
            z = jax.nn.sigmoid(gi[:, H:2 * H] + gh[:, H:2 * H])
            n = jnp.tanh(gi[:, 2 * H:] + r * gh[:, 2 * H:])
            hn = (1.0 - z) * n + z * h
            new_hidden.append(hn)
            x = hn
        hidden = jnp.stack(new_hidden)
        preds.append(dot(x, fc_w_t) + raw["fc_b"])
    return jnp.stack(preds), hidden


if __name__ == "__main__":
    # Hyperparameters implied by Decoder.__init__ (cell_type = "GRU")
    output_size = 64     # vocab
    embedding_dim = 32
    hidden_dim = 32
    num_layers = 2
    batch = 8
    steps = 8            # fused autoregressive decode steps (teacher-forced tokens)

    key = jax.random.PRNGKey(0)
    k_params, k_tok, k_hid = jax.random.split(key, 3)

    raw = make_params(k_params, output_size, embedding_dim, hidden_dim, num_layers)
    kparams, dims = prepare_kernel_params(raw)
    V, E, H, Hp, Ep, Vp = dims

    tokens = jax.random.randint(k_tok, (steps, batch), 0, output_size, dtype=jnp.int32)
    hidden = 0.1 * jax.random.normal(k_hid, (num_layers, batch, hidden_dim), jnp.float32)
    hidden_p = pad_hidden(hidden, Hp)

    pred_p, h_new_p = decoder_decode(tokens, hidden_p,
                                     kparams["embedding"], kparams["w_rzn"],
                                     kparams["b_rzn"], kparams["fc_w"], kparams["fc_b"])
    jax.block_until_ready((pred_p, h_new_p))

    pred = np.asarray(pred_p[:, :, :V])
    h_new = np.asarray(h_new_p[:, :, :H])
    assert pred.shape == (steps, batch, output_size)
    assert h_new.shape == (num_layers, batch, hidden_dim)

    # Tight check vs a reference that mirrors the kernel's mixed precision
    # (bf16 weights / bf16 dot inputs, f32 accumulation & gate math).
    pred_ref_b, h_ref_b = decoder_decode_ref(raw, tokens, hidden, mirror_bf16=True)
    np.testing.assert_allclose(pred, np.asarray(pred_ref_b), rtol=2e-3, atol=2e-3)
    np.testing.assert_allclose(h_new, np.asarray(h_ref_b), rtol=2e-3, atol=2e-3)

    # Looser semantic check vs the full-f32 torch-equivalent reference.
    pred_ref_f, h_ref_f = decoder_decode_ref(raw, tokens, hidden, mirror_bf16=False)
    np.testing.assert_allclose(pred, np.asarray(pred_ref_f), rtol=3e-2, atol=3e-2)
    np.testing.assert_allclose(h_new, np.asarray(h_ref_f), rtol=3e-2, atol=3e-2)

    # Padded hidden lanes must stay exactly zero (valid carry for further fused
    # decode calls), and padded logit lanes (-1e9 bias) can never win argmax.
    assert not np.any(np.asarray(h_new_p[:, :, hidden_dim:]))
    assert np.all(np.argmax(np.asarray(pred_p), axis=-1) < output_size)

    print("KERNEL_OK")
</pallas_src>

<mosaic_0001>
module attributes {stable_mosaic.version = 11 : i64} {
  func.func @gru_decode_kernel(%arg0: i32, %arg1: memref<8x8xi32, #tpu.memory_space<smem>>, %arg2: memref<2x8x128xf32, #tpu.memory_space<vmem>>, %arg3: memref<128x128xbf16, #tpu.memory_space<vmem>>, %arg4: memref<2x256x512xbf16, #tpu.memory_space<vmem>>, %arg5: memref<2x1x512xf32, #tpu.memory_space<vmem>>, %arg6: memref<128x128xbf16, #tpu.memory_space<vmem>>, %arg7: memref<1x128xf32, #tpu.memory_space<vmem>>, %arg8: memref<1x8x128xf32, #tpu.memory_space<vmem>>, %arg9: memref<2x8x128xf32, #tpu.memory_space<vmem>>, %arg10: memref<2x8x128xf32, #tpu.memory_space<vmem>>) attributes {dimension_semantics = [#tpu.dimension_semantics<arbitrary>], iteration_bounds = array<i64: 8>, scalar_prefetch = 1 : i64, scratch_operands = 1 : i64, tpu.core_type = #tpu.core_type<tc>, window_params = [{pipeline_mode = #tpu.pipeline_mode<synchronous>, transform_indices = @transform_0, window_bounds = array<i64: 2, 8, 128>}, {pipeline_mode = #tpu.pipeline_mode<synchronous>, transform_indices = @transform_1, window_bounds = array<i64: 128, 128>}, {pipeline_mode = #tpu.pipeline_mode<synchronous>, transform_indices = @transform_2, window_bounds = array<i64: 2, 256, 512>}, {pipeline_mode = #tpu.pipeline_mode<synchronous>, transform_indices = @transform_3, window_bounds = array<i64: 2, 1, 512>}, {pipeline_mode = #tpu.pipeline_mode<synchronous>, transform_indices = @transform_4, window_bounds = array<i64: 128, 128>}, {pipeline_mode = #tpu.pipeline_mode<synchronous>, transform_indices = @transform_5, window_bounds = array<i64: 1, 128>}, {transform_indices = @transform_6, window_bounds = array<i64: 1, 8, 128>}, {pipeline_mode = #tpu.pipeline_mode<synchronous>, transform_indices = @transform_7, window_bounds = array<i64: 2, 8, 128>}]} {
    %c0_i32 = arith.constant 0 : i32
    %0 = arith.cmpi eq, %arg0, %c0_i32 : i32
    %1 = arith.extui %0 : i1 to i32
    %c0_i32_0 = arith.constant 0 : i32
    %2 = arith.cmpi ne, %1, %c0_i32_0 : i32
    scf.if %2 {
      %c0_55 = arith.constant 0 : index
      %c0_56 = arith.constant 0 : index
      %c0_57 = arith.constant 0 : index
      %165 = vector.load %arg2[%c0_55, %c0_56, %c0_57] : memref<2x8x128xf32, #tpu.memory_space<vmem>>, vector<2x8x128xf32>
      %c0_58 = arith.constant 0 : index
      %c0_59 = arith.constant 0 : index
      %c0_60 = arith.constant 0 : index
      %166 = vector.load %arg10[%c0_58, %c0_59, %c0_60] : memref<2x8x128xf32, #tpu.memory_space<vmem>>, vector<2x8x128xf32>
      tpu.vector_store %arg10[%c0_58, %c0_59, %c0_60], %165 {strides = array<i32>} : memref<2x8x128xf32, #tpu.memory_space<vmem>>, vector<2x8x128xf32>,
    } else {
    }
    %3 = tpu.iota {dimensions = array<i32: 0>} : vector<8x128xi32>
    %4 = tpu.iota {dimensions = array<i32: 1>} : vector<8x128xi32>
    %cst = arith.constant 0.000000e+00 : f32
    %5 = vector.broadcast %cst : f32 to vector<8x128xf32>
    %6 = arith.index_cast %arg0 : i32 to index
    %c0 = arith.constant 0 : index
    %7 = memref.load %arg1[%6, %c0] : memref<8x8xi32, #tpu.memory_space<smem>>
    %c0_i32_1 = arith.constant 0 : i32
    %8 = vector.broadcast %c0_i32_1 : i32 to vector<8x128xi32>
    %9 = arith.cmpi eq, %3, %8 : vector<8x128xi32>
    %10 = vector.broadcast %7 : i32 to vector<8x128xi32>
    %11 = arith.cmpi eq, %4, %10 : vector<8x128xi32>
    %12 = arith.andi %9, %11 : vector<8x128xi1>
    %cst_2 = arith.constant 1.000000e+00 : f32
    %13 = vector.broadcast %cst_2 : f32 to vector<8x128xf32>
    %14 = arith.select %12, %13, %5 : vector<8x128xi1>, vector<8x128xf32>
    %15 = arith.index_cast %arg0 : i32 to index
    %c1 = arith.constant 1 : index
    %16 = memref.load %arg1[%15, %c1] : memref<8x8xi32, #tpu.memory_space<smem>>
    %c1_i32 = arith.constant 1 : i32
    %17 = vector.broadcast %c1_i32 : i32 to vector<8x128xi32>
    %18 = arith.cmpi eq, %3, %17 : vector<8x128xi32>
    %19 = vector.broadcast %16 : i32 to vector<8x128xi32>
    %20 = arith.cmpi eq, %4, %19 : vector<8x128xi32>
    %21 = arith.andi %18, %20 : vector<8x128xi1>
    %cst_3 = arith.constant 1.000000e+00 : f32
    %22 = vector.broadcast %cst_3 : f32 to vector<8x128xf32>
    %23 = arith.select %21, %22, %14 : vector<8x128xi1>, vector<8x128xf32>
    %24 = arith.index_cast %arg0 : i32 to index
    %c2 = arith.constant 2 : index
    %25 = memref.load %arg1[%24, %c2] : memref<8x8xi32, #tpu.memory_space<smem>>
    %c2_i32 = arith.constant 2 : i32
    %26 = vector.broadcast %c2_i32 : i32 to vector<8x128xi32>
    %27 = arith.cmpi eq, %3, %26 : vector<8x128xi32>
    %28 = vector.broadcast %25 : i32 to vector<8x128xi32>
    %29 = arith.cmpi eq, %4, %28 : vector<8x128xi32>
    %30 = arith.andi %27, %29 : vector<8x128xi1>
    %cst_4 = arith.constant 1.000000e+00 : f32
    %31 = vector.broadcast %cst_4 : f32 to vector<8x128xf32>
    %32 = arith.select %30, %31, %23 : vector<8x128xi1>, vector<8x128xf32>
    %33 = arith.index_cast %arg0 : i32 to index
    %c3 = arith.constant 3 : index
    %34 = memref.load %arg1[%33, %c3] : memref<8x8xi32, #tpu.memory_space<smem>>
    %c3_i32 = arith.constant 3 : i32
    %35 = vector.broadcast %c3_i32 : i32 to vector<8x128xi32>
    %36 = arith.cmpi eq, %3, %35 : vector<8x128xi32>
    %37 = vector.broadcast %34 : i32 to vector<8x128xi32>
    %38 = arith.cmpi eq, %4, %37 : vector<8x128xi32>
    %39 = arith.andi %36, %38 : vector<8x128xi1>
    %cst_5 = arith.constant 1.000000e+00 : f32
    %40 = vector.broadcast %cst_5 : f32 to vector<8x128xf32>
    %41 = arith.select %39, %40, %32 : vector<8x128xi1>, vector<8x128xf32>
    %42 = arith.index_cast %arg0 : i32 to index
    %c4 = arith.constant 4 : index
    %43 = memref.load %arg1[%42, %c4] : memref<8x8xi32, #tpu.memory_space<smem>>
    %c4_i32 = arith.constant 4 : i32
    %44 = vector.broadcast %c4_i32 : i32 to vector<8x128xi32>
    %45 = arith.cmpi eq, %3, %44 : vector<8x128xi32>
    %46 = vector.broadcast %43 : i32 to vector<8x128xi32>
    %47 = arith.cmpi eq, %4, %46 : vector<8x128xi32>
    %48 = arith.andi %45, %47 : vector<8x128xi1>
    %cst_6 = arith.constant 1.000000e+00 : f32
    %49 = vector.broadcast %cst_6 : f32 to vector<8x128xf32>
    %50 = arith.select %48, %49, %41 : vector<8x128xi1>, vector<8x128xf32>
    %51 = arith.index_cast %arg0 : i32 to index
    %c5 = arith.constant 5 : index
    %52 = memref.load %arg1[%51, %c5] : memref<8x8xi32, #tpu.memory_space<smem>>
    %c5_i32 = arith.constant 5 : i32
    %53 = vector.broadcast %c5_i32 : i32 to vector<8x128xi32>
    %54 = arith.cmpi eq, %3, %53 : vector<8x128xi32>
    %55 = vector.broadcast %52 : i32 to vector<8x128xi32>
    %56 = arith.cmpi eq, %4, %55 : vector<8x128xi32>
    %57 = arith.andi %54, %56 : vector<8x128xi1>
    %cst_7 = arith.constant 1.000000e+00 : f32
    %58 = vector.broadcast %cst_7 : f32 to vector<8x128xf32>
    %59 = arith.select %57, %58, %50 : vector<8x128xi1>, vector<8x128xf32>
    %60 = arith.index_cast %arg0 : i32 to index
    %c6 = arith.constant 6 : index
    %61 = memref.load %arg1[%60, %c6] : memref<8x8xi32, #tpu.memory_space<smem>>
    %c6_i32 = arith.constant 6 : i32
    %62 = vector.broadcast %c6_i32 : i32 to vector<8x128xi32>
    %63 = arith.cmpi eq, %3, %62 : vector<8x128xi32>
    %64 = vector.broadcast %61 : i32 to vector<8x128xi32>
    %65 = arith.cmpi eq, %4, %64 : vector<8x128xi32>
    %66 = arith.andi %63, %65 : vector<8x128xi1>
    %cst_8 = arith.constant 1.000000e+00 : f32
    %67 = vector.broadcast %cst_8 : f32 to vector<8x128xf32>
    %68 = arith.select %66, %67, %59 : vector<8x128xi1>, vector<8x128xf32>
    %69 = arith.index_cast %arg0 : i32 to index
    %c7 = arith.constant 7 : index
    %70 = memref.load %arg1[%69, %c7] : memref<8x8xi32, #tpu.memory_space<smem>>
    %c7_i32 = arith.constant 7 : i32
    %71 = vector.broadcast %c7_i32 : i32 to vector<8x128xi32>
    %72 = arith.cmpi eq, %3, %71 : vector<8x128xi32>
    %73 = vector.broadcast %70 : i32 to vector<8x128xi32>
    %74 = arith.cmpi eq, %4, %73 : vector<8x128xi32>
    %75 = arith.andi %72, %74 : vector<8x128xi1>
    %cst_9 = arith.constant 1.000000e+00 : f32
    %76 = vector.broadcast %cst_9 : f32 to vector<8x128xf32>
    %77 = arith.select %75, %76, %68 : vector<8x128xi1>, vector<8x128xf32>
    %78 = arith.truncf %77 : vector<8x128xf32> to vector<8x128xbf16>
    %c0_10 = arith.constant 0 : index
    %c0_11 = arith.constant 0 : index
    %79 = vector.load %arg3[%c0_10, %c0_11] : memref<128x128xbf16, #tpu.memory_space<vmem>>, vector<128x128xbf16>
    %cst_12 = arith.constant dense<0.000000e+00> : vector<8x128xf32>
    %80 = tpu.matmul %78, %79, %cst_12 {dimension_numbers = #tpu.dot_dimension_numbers<[1], [0], [0], [1], [0, 0, 1, 1], [], []>} : vector<8x128xbf16>, vector<128x128xbf16>, vector<8x128xf32> -> vector<8x128xf32>
    %c0_13 = arith.constant 0 : index
    %c0_14 = arith.constant 0 : index
    %c0_15 = arith.constant 0 : index
    %81 = vector.load %arg10[%c0_13, %c0_14, %c0_15] : memref<2x8x128xf32, #tpu.memory_space<vmem>>, vector<1x8x128xf32>
    %82 = vector.shape_cast %81 : vector<1x8x128xf32> to vector<8x128xf32>
    %83 = tpu.concatenate %80, %82 in 1 : vector<8x128xf32>, vector<8x128xf32> -> vector<8x256xf32>
    %84 = arith.truncf %83 : vector<8x256xf32> to vector<8x256xbf16>
    %c0_16 = arith.constant 0 : index
    %c0_17 = arith.constant 0 : index
    %c0_18 = arith.constant 0 : index
    %85 = vector.load %arg4[%c0_16, %c0_17, %c0_18] : memref<2x256x512xbf16, #tpu.memory_space<vmem>>, vector<1x256x512xbf16>
    %86 = vector.shape_cast %85 : vector<1x256x512xbf16> to vector<256x512xbf16>
    %cst_19 = arith.constant dense<0.000000e+00> : vector<8x512xf32>
    %87 = tpu.matmul %84, %86, %cst_19 {dimension_numbers = #tpu.dot_dimension_numbers<[1], [0], [0], [1], [0, 0, 1, 1], [], []>} : vector<8x256xbf16>, vector<256x512xbf16>, vector<8x512xf32> -> vector<8x512xf32>
    %c0_20 = arith.constant 0 : index
    %c0_21 = arith.constant 0 : index
    %c0_22 = arith.constant 0 : index
    %88 = vector.load %arg5[%c0_20, %c0_21, %c0_22] : memref<2x1x512xf32, #tpu.memory_space<vmem>>, vector<1x1x512xf32>
    %89 = vector.shape_cast %88 : vector<1x1x512xf32> to vector<1x512xf32>
    %90 = vector.broadcast %89 : vector<1x512xf32> to vector<8x512xf32>
    %91 = arith.addf %87, %90 : vector<8x512xf32>
    %92 = vector.extract_strided_slice %91 {offsets = [0, 0], sizes = [8, 128], strides = [1, 1]} : vector<8x512xf32> to vector<8x128xf32>
    %93 = arith.negf %92 : vector<8x128xf32>
    %94 = math.exp %93 : vector<8x128xf32>
    %cst_23 = arith.constant 1.000000e+00 : f32
    %95 = vector.broadcast %cst_23 : f32 to vector<8x128xf32>
    %96 = arith.addf %95, %94 : vector<8x128xf32>
    %97 = arith.divf %95, %96 : vector<8x128xf32>
    %98 = vector.extract_strided_slice %91 {offsets = [0, 128], sizes = [8, 128], strides = [1, 1]} : vector<8x512xf32> to vector<8x128xf32>
    %99 = arith.negf %98 : vector<8x128xf32>
    %100 = math.exp %99 : vector<8x128xf32>
    %cst_24 = arith.constant 1.000000e+00 : f32
    %101 = vector.broadcast %cst_24 : f32 to vector<8x128xf32>
    %102 = arith.addf %101, %100 : vector<8x128xf32>
    %103 = arith.divf %101, %102 : vector<8x128xf32>
    %104 = vector.extract_strided_slice %91 {offsets = [0, 256], sizes = [8, 128], strides = [1, 1]} : vector<8x512xf32> to vector<8x128xf32>
    %105 = vector.extract_strided_slice %91 {offsets = [0, 384], sizes = [8, 128], strides = [1, 1]} : vector<8x512xf32> to vector<8x128xf32>
    %106 = arith.mulf %97, %105 : vector<8x128xf32>
    %107 = arith.addf %104, %106 : vector<8x128xf32>
    %108 = math.tanh %107 : vector<8x128xf32>
    %cst_25 = arith.constant 1.000000e+00 : f32
    %109 = vector.broadcast %cst_25 : f32 to vector<8x128xf32>
    %110 = arith.subf %109, %103 : vector<8x128xf32>
    %111 = arith.mulf %110, %108 : vector<8x128xf32>
    %112 = arith.mulf %103, %82 : vector<8x128xf32>
    %113 = arith.addf %111, %112 : vector<8x128xf32>
    %c0_26 = arith.constant 0 : index
    %c0_27 = arith.constant 0 : index
    %c0_28 = arith.constant 0 : index
    %114 = vector.load %arg10[%c0_26, %c0_27, %c0_28] : memref<2x8x128xf32, #tpu.memory_space<vmem>>, vector<1x8x128xf32>
    %115 = vector.shape_cast %114 : vector<1x8x128xf32> to vector<8x128xf32>
    %116 = vector.shape_cast %113 : vector<8x128xf32> to vector<1x8x128xf32>
    tpu.vector_store %arg10[%c0_26, %c0_27, %c0_28], %116 {strides = array<i32>} : memref<2x8x128xf32, #tpu.memory_space<vmem>>, vector<1x8x128xf32>,
    %c1_29 = arith.constant 1 : index
    %c0_30 = arith.constant 0 : index
    %c0_31 = arith.constant 0 : index
    %117 = vector.load %arg10[%c1_29, %c0_30, %c0_31] : memref<2x8x128xf32, #tpu.memory_space<vmem>>, vector<1x8x128xf32>
    %118 = vector.shape_cast %117 : vector<1x8x128xf32> to vector<8x128xf32>
    %119 = tpu.concatenate %113, %118 in 1 : vector<8x128xf32>, vector<8x128xf32> -> vector<8x256xf32>
    %120 = arith.truncf %119 : vector<8x256xf32> to vector<8x256xbf16>
    %c1_32 = arith.constant 1 : index
    %c0_33 = arith.constant 0 : index
    %c0_34 = arith.constant 0 : index
    %121 = vector.load %arg4[%c1_32, %c0_33, %c0_34] : memref<2x256x512xbf16, #tpu.memory_space<vmem>>, vector<1x256x512xbf16>
    %122 = vector.shape_cast %121 : vector<1x256x512xbf16> to vector<256x512xbf16>
    %cst_35 = arith.constant dense<0.000000e+00> : vector<8x512xf32>
    %123 = tpu.matmul %120, %122, %cst_35 {dimension_numbers = #tpu.dot_dimension_numbers<[1], [0], [0], [1], [0, 0, 1, 1], [], []>} : vector<8x256xbf16>, vector<256x512xbf16>, vector<8x512xf32> -> vector<8x512xf32>
    %c1_36 = arith.constant 1 : index
    %c0_37 = arith.constant 0 : index
    %c0_38 = arith.constant 0 : index
    %124 = vector.load %arg5[%c1_36, %c0_37, %c0_38] : memref<2x1x512xf32, #tpu.memory_space<vmem>>, vector<1x1x512xf32>
    %125 = vector.shape_cast %124 : vector<1x1x512xf32> to vector<1x512xf32>
    %126 = vector.broadcast %125 : vector<1x512xf32> to vector<8x512xf32>
    %127 = arith.addf %123, %126 : vector<8x512xf32>
    %128 = vector.extract_strided_slice %127 {offsets = [0, 0], sizes = [8, 128], strides = [1, 1]} : vector<8x512xf32> to vector<8x128xf32>
    %129 = arith.negf %128 : vector<8x128xf32>
    %130 = math.exp %129 : vector<8x128xf32>
    %cst_39 = arith.constant 1.000000e+00 : f32
    %131 = vector.broadcast %cst_39 : f32 to vector<8x128xf32>
    %132 = arith.addf %131, %130 : vector<8x128xf32>
    %133 = arith.divf %131, %132 : vector<8x128xf32>
    %134 = vector.extract_strided_slice %127 {offsets = [0, 128], sizes = [8, 128], strides = [1, 1]} : vector<8x512xf32> to vector<8x128xf32>
    %135 = arith.negf %134 : vector<8x128xf32>
    %136 = math.exp %135 : vector<8x128xf32>
    %cst_40 = arith.constant 1.000000e+00 : f32
    %137 = vector.broadcast %cst_40 : f32 to vector<8x128xf32>
    %138 = arith.addf %137, %136 : vector<8x128xf32>
    %139 = arith.divf %137, %138 : vector<8x128xf32>
    %140 = vector.extract_strided_slice %127 {offsets = [0, 256], sizes = [8, 128], strides = [1, 1]} : vector<8x512xf32> to vector<8x128xf32>
    %141 = vector.extract_strided_slice %127 {offsets = [0, 384], sizes = [8, 128], strides = [1, 1]} : vector<8x512xf32> to vector<8x128xf32>
    %142 = arith.mulf %133, %141 : vector<8x128xf32>
    %143 = arith.addf %140, %142 : vector<8x128xf32>
    %144 = math.tanh %143 : vector<8x128xf32>
    %cst_41 = arith.constant 1.000000e+00 : f32
    %145 = vector.broadcast %cst_41 : f32 to vector<8x128xf32>
    %146 = arith.subf %145, %139 : vector<8x128xf32>
    %147 = arith.mulf %146, %144 : vector<8x128xf32>
    %148 = arith.mulf %139, %118 : vector<8x128xf32>
    %149 = arith.addf %147, %148 : vector<8x128xf32>
    %c1_42 = arith.constant 1 : index
    %c0_43 = arith.constant 0 : index
    %c0_44 = arith.constant 0 : index
    %150 = vector.load %arg10[%c1_42, %c0_43, %c0_44] : memref<2x8x128xf32, #tpu.memory_space<vmem>>, vector<1x8x128xf32>
    %151 = vector.shape_cast %150 : vector<1x8x128xf32> to vector<8x128xf32>
    %152 = vector.shape_cast %149 : vector<8x128xf32> to vector<1x8x128xf32>
    tpu.vector_store %arg10[%c1_42, %c0_43, %c0_44], %152 {strides = array<i32>} : memref<2x8x128xf32, #tpu.memory_space<vmem>>, vector<1x8x128xf32>,
    %153 = arith.truncf %149 : vector<8x128xf32> to vector<8x128xbf16>
    %c0_45 = arith.constant 0 : index
    %c0_46 = arith.constant 0 : index
    %154 = vector.load %arg6[%c0_45, %c0_46] : memref<128x128xbf16, #tpu.memory_space<vmem>>, vector<128x128xbf16>
    %cst_47 = arith.constant dense<0.000000e+00> : vector<8x128xf32>
    %155 = tpu.matmul %153, %154, %cst_47 {dimension_numbers = #tpu.dot_dimension_numbers<[1], [0], [0], [1], [0, 0, 1, 1], [], []>} : vector<8x128xbf16>, vector<128x128xbf16>, vector<8x128xf32> -> vector<8x128xf32>
    %c0_48 = arith.constant 0 : index
    %c0_49 = arith.constant 0 : index
    %156 = vector.load %arg7[%c0_48, %c0_49] : memref<1x128xf32, #tpu.memory_space<vmem>>, vector<1x128xf32>
    %157 = vector.broadcast %156 : vector<1x128xf32> to vector<8x128xf32>
    %158 = arith.addf %155, %157 : vector<8x128xf32>
    %c0_50 = arith.constant 0 : index
    %c0_51 = arith.constant 0 : index
    %c0_52 = arith.constant 0 : index
    %159 = vector.load %arg8[%c0_50, %c0_51, %c0_52] : memref<1x8x128xf32, #tpu.memory_space<vmem>>, vector<1x8x128xf32>
    %160 = vector.shape_cast %159 : vector<1x8x128xf32> to vector<8x128xf32>
    %161 = vector.shape_cast %158 : vector<8x128xf32> to vector<1x8x128xf32>
    tpu.vector_store %arg8[%c0_50, %c0_51, %c0_52], %161 {strides = array<i32>} : memref<1x8x128xf32, #tpu.memory_space<vmem>>, vector<1x8x128xf32>,
    %c7_i32_53 = arith.constant 7 : i32
    %162 = arith.cmpi eq, %arg0, %c7_i32_53 : i32
    %163 = arith.extui %162 : i1 to i32
    %c0_i32_54 = arith.constant 0 : i32
    %164 = arith.cmpi ne, %163, %c0_i32_54 : i32
    scf.if %164 {
      %c0_55 = arith.constant 0 : index
      %c0_56 = arith.constant 0 : index
      %c0_57 = arith.constant 0 : index
      %165 = vector.load %arg10[%c0_55, %c0_56, %c0_57] : memref<2x8x128xf32, #tpu.memory_space<vmem>>, vector<2x8x128xf32>
      %c0_58 = arith.constant 0 : index
      %c0_59 = arith.constant 0 : index
      %c0_60 = arith.constant 0 : index
      %166 = vector.load %arg9[%c0_58, %c0_59, %c0_60] : memref<2x8x128xf32, #tpu.memory_space<vmem>>, vector<2x8x128xf32>
      tpu.vector_store %arg9[%c0_58, %c0_59, %c0_60], %165 {strides = array<i32>} : memref<2x8x128xf32, #tpu.memory_space<vmem>>, vector<2x8x128xf32>,
    } else {
    }
    return
  }
  func.func @transform_0(%arg0: i32, %arg1: memref<8x8xi32, #tpu.memory_space<smem>>) -> (i32, i32, i32) {
    %c0_i32 = arith.constant 0 : i32
    %c0_i32_0 = arith.constant 0 : i32
    %c0_i32_1 = arith.constant 0 : i32
    %c0_i32_2 = arith.constant 0 : i32
    return %c0_i32, %c0_i32_0, %c0_i32_1 : i32, i32, i32
  }
  func.func @transform_1(%arg0: i32, %arg1: memref<8x8xi32, #tpu.memory_space<smem>>) -> (i32, i32) {
    %c0_i32 = arith.constant 0 : i32
    %c0_i32_0 = arith.constant 0 : i32
    %c0_i32_1 = arith.constant 0 : i32
    return %c0_i32, %c0_i32_0 : i32, i32
  }
  func.func @transform_2(%arg0: i32, %arg1: memref<8x8xi32, #tpu.memory_space<smem>>) -> (i32, i32, i32) {
    %c0_i32 = arith.constant 0 : i32
    %c0_i32_0 = arith.constant 0 : i32
    %c0_i32_1 = arith.constant 0 : i32
    %c0_i32_2 = arith.constant 0 : i32
    return %c0_i32, %c0_i32_0, %c0_i32_1 : i32, i32, i32
  }
  func.func @transform_3(%arg0: i32, %arg1: memref<8x8xi32, #tpu.memory_space<smem>>) -> (i32, i32, i32) {
    %c0_i32 = arith.constant 0 : i32
    %c0_i32_0 = arith.constant 0 : i32
    %c0_i32_1 = arith.constant 0 : i32
    %c0_i32_2 = arith.constant 0 : i32
    return %c0_i32, %c0_i32_0, %c0_i32_1 : i32, i32, i32
  }
  func.func @transform_4(%arg0: i32, %arg1: memref<8x8xi32, #tpu.memory_space<smem>>) -> (i32, i32) {
    %c0_i32 = arith.constant 0 : i32
    %c0_i32_0 = arith.constant 0 : i32
    %c0_i32_1 = arith.constant 0 : i32
    return %c0_i32, %c0_i32_0 : i32, i32
  }
  func.func @transform_5(%arg0: i32, %arg1: memref<8x8xi32, #tpu.memory_space<smem>>) -> (i32, i32) {
    %c0_i32 = arith.constant 0 : i32
    %c0_i32_0 = arith.constant 0 : i32
    %c0_i32_1 = arith.constant 0 : i32
    return %c0_i32, %c0_i32_0 : i32, i32
  }
  func.func @transform_6(%arg0: i32, %arg1: memref<8x8xi32, #tpu.memory_space<smem>>) -> (i32, i32, i32) {
    %c0_i32 = arith.constant 0 : i32
    %c0_i32_0 = arith.constant 0 : i32
    %c0_i32_1 = arith.constant 0 : i32
    return %arg0, %c0_i32, %c0_i32_0 : i32, i32, i32
  }
  func.func @transform_7(%arg0: i32, %arg1: memref<8x8xi32, #tpu.memory_space<smem>>) -> (i32, i32, i32) {
    %c0_i32 = arith.constant 0 : i32
    %c0_i32_0 = arith.constant 0 : i32
    %c0_i32_1 = arith.constant 0 : i32
    %c0_i32_2 = arith.constant 0 : i32
    return %c0_i32, %c0_i32_0, %c0_i32_1 : i32, i32, i32
  }
}

</mosaic_0001>

<llo_original>
// kernel: _decode_call.1
$region0: #{_decode_call.1}
  #allocation0 [shape = 'u32[]', space=smem, size = 0x4, offset = 0x4, fixed_abs, tag = 'smem constant byte address 0x4 - core index']
  #allocation1 [shape = 'u32[144,128]{1,0:T(1,128)}', space=vmem, size = 0x12000, scoped, tag = 'internal scratch']
  #allocation2 [shape = 'f32[2,8,128]{2,1,0:T(8,128)}', space=vmem, size = 0x2000, scoped, tag = 'scratch operand']
  #allocation3 [shape = 's32[1]{0}', space=sflag, size = 0x4, scoped, tag = 'scoped memory for _decode_call.1']
  #allocation4 [shape = 'u8[4096]{0}', space=smem, size = 0x1000, scoped, tag = 'prefetched SMEM operand 0']
  %s0 = inlined_call_operand.hbm [shape: s32[8,8], index: 0, kind: input, shape index: {}]
  %s1 = inlined_call_operand.hbm [shape: f32[2,8,128], index: 1, kind: input, shape index: {}]
  %s2 = inlined_call_operand.hbm [shape: bf16[128,128], index: 2, kind: input, shape index: {}]
  %s3 = inlined_call_operand.hbm [shape: bf16[2,256,512], index: 3, kind: input, shape index: {}]
  %s4 = inlined_call_operand.hbm [shape: f32[2,1,512], index: 4, kind: input, shape index: {}]
  %s5 = inlined_call_operand.hbm [shape: bf16[128,128], index: 5, kind: input, shape index: {}]
  %s6 = inlined_call_operand.vmem [shape: f32[1,128], index: 6, kind: input, shape index: {}]
  %s7 = inlined_call_operand.hbm [shape: f32[8,8,128], index: 7, kind: output, shape index: {0}]
  %s8 = inlined_call_operand.hbm [shape: f32[2,8,128], index: 8, kind: output, shape index: {1}]
  %9 = xla_tuple %s7, %s8
  %s10 = sld [smem:[#allocation0]]
  $region93: #{_decode_call.1} parent=0
    _
  %s12 = ssub.s32 1, %s10
  %s13 = scalar_select 0, %s12, %s10
  %15 = dma.hbm_to_smem %s0, 128, [#allocation4], [#allocation3]
  %16 = dma.done [#allocation3], 128
  %17 = sfence
  $region1: #{_decode_call.1} parent=0
    #allocation5 [shape = 'u8[8192]{0}', space=vmem, size = 0x2000, scoped, tag = 'input window, operand 1, single buffered']
    #allocation6 [shape = 's32[2]{0}', space=sflag, size = 0x8, scoped, tag = 'scoped memory for _decode_call.1']
    #allocation7 [shape = 's32[2]{0}', space=sflag, size = 0x8, scoped, tag = 'scoped memory for _decode_call.1']
    #allocation8 [shape = 'u8[32768]{0}', space=vmem, size = 0x8000, scoped, tag = 'input window, operand 2, single buffered']
    #allocation9 [shape = 's32[1]{0}', space=sflag, size = 0x4, scoped, tag = 'scoped memory for _decode_call.1']
    #allocation10 [shape = 'u8[524288]{0}', space=vmem, size = 0x80000, scoped, tag = 'input window, operand 3, single buffered']
    #allocation11 [shape = 'u8[4096]{0}', space=vmem, size = 0x1000, scoped, tag = 'input window, operand 4, single buffered']
    #allocation12 [shape = 's32[1]{0}', space=sflag, size = 0x4, scoped, tag = 'scoped memory for _decode_call.1']
    #allocation13 [shape = 'u8[32768]{0}', space=vmem, size = 0x8000, scoped, tag = 'input window, operand 5, single buffered']
    #allocation14 [shape = 'u8[8192]{0}', space=vmem, size = 0x2000, scoped, tag = 'output window, operand 0']
    #allocation15 [shape = 'u8[8192]{0}', space=vmem, size = 0x2000, scoped, tag = 'output window, operand 1, single buffered']
    #allocation16 [shape = 's32[1]{0}', space=sflag, size = 0x4, scoped, tag = 'scoped memory for _decode_call.1']
    %18 = vsyncpa [#allocation6], 0
    %19 = vsyncpa [#allocation9], 0
    %20 = vsyncpa [#allocation12], 0
    %21 = vsyncpa [#allocation7], 0
    %s22 = scalar_lea.sflag [#allocation7], 1
    %23 = vsyncpa %s22, 0
    %24 = vsyncpa [#allocation16], 0
    loop: start=0, step=1, limit=10
    $region2: #{_decode_call.1} parent=1 // loop_pre_header
      _
    $region3: #{_decode_call.1} parent=1 // loop_header
      %s26 = sphi 0, %s30
      %p27 = scmp.ge.s32.totalorder %s26, 10
      %s34 = sphi 0, %s34
      %s36 = sphi 0, %s34
      %s37 = sphi 0, %s36
      %s51 = sphi 0, %s37
      %s55 = sphi 0, %s55
      %s57 = sphi 0, %s55
      %s58 = sphi 0, %s57
      %s72 = sphi 0, %s58
      %s76 = sphi 0, %s76
      %s78 = sphi 0, %s76
      %s79 = sphi 0, %s78
      %s93 = sphi 0, %s79
      %s97 = sphi 0, %s97
      %s99 = sphi 0, %s97
      %s100 = sphi 0, %s99
      %s114 = sphi 0, %s100
      %s118 = sphi 0, %s118
      %s120 = sphi 0, %s118
      %s121 = sphi 0, %s120
      %s135 = sphi 0, %s121
      %s139 = sphi 0, %s139
      %s141 = sphi 0, %s139
      %s142 = sphi 0, %s141
      %s156 = sphi 0, %s142
      %s162 = sphi 0, %s164
      %s165 = sphi 0, %s162
      %s166 = sphi 0, %s165
      %s182 = sphi 0, %s166
      %s186 = sphi 0, %s186
      %s188 = sphi 0, %s186
      %s189 = sphi 0, %s188
      %s203 = sphi 0, %s189
    $region4: #{_decode_call.1} parent=1 // loop_header_branch
      %29 = sbr.rel (%p27) target = $region8
    $region5: #{_decode_call.1} parent=1 // loop_body
      %s31 = ssub.s32 %s26, 1
      %s32 = ssub.s32 %s26, 2
      %s33 = sadd.s32 %s26, 1
      %s35 = sadd.s32 %s34, 1
      %p38 = scmp.eq.s32.totalorder %s26, 7
      %p39 = scmp.ne.s32.totalorder %s34, %s36
      %p40 = scmp.eq.s32.totalorder %s26, 0
      %p41 = por %p39, %p40
      %p42 = scmp.ne.s32.totalorder %s34, %s36
      %p43 = scmp.eq.s32.totalorder %s31, 7
      %p44 = por %p42, %p43
      %p45 = scmp.ne.s32.totalorder %s36, %s37
      %p46 = scmp.eq.s32.totalorder %s31, 0
      %p47 = por %p45, %p46
      %p48 = scmp.ne.s32.totalorder %s36, %s37
      %p49 = scmp.eq.s32.totalorder %s32, 7
      %p50 = por %p48, %p49
      %p52 = scmp.ne.s32.totalorder %s37, %s51
      %p53 = scmp.eq.s32.totalorder %s32, 0
      %p54 = por %p52, %p53
      %s56 = sadd.s32 %s55, 1
      %p59 = scmp.eq.s32.totalorder %s26, 7
      %p60 = scmp.ne.s32.totalorder %s55, %s57
      %p61 = scmp.eq.s32.totalorder %s26, 0
      %p62 = por %p60, %p61
      %p63 = scmp.ne.s32.totalorder %s55, %s57
      %p64 = scmp.eq.s32.totalorder %s31, 7
      %p65 = por %p63, %p64
      %p66 = scmp.ne.s32.totalorder %s57, %s58
      %p67 = scmp.eq.s32.totalorder %s31, 0
      %p68 = por %p66, %p67
      %p69 = scmp.ne.s32.totalorder %s57, %s58
      %p70 = scmp.eq.s32.totalorder %s32, 7
      %p71 = por %p69, %p70
      %p73 = scmp.ne.s32.totalorder %s58, %s72
      %p74 = scmp.eq.s32.totalorder %s32, 0
      %p75 = por %p73, %p74
      %s77 = sadd.s32 %s76, 1
      %p80 = scmp.eq.s32.totalorder %s26, 7
      %p81 = scmp.ne.s32.totalorder %s76, %s78
      %p82 = scmp.eq.s32.totalorder %s26, 0
      %p83 = por %p81, %p82
      %p84 = scmp.ne.s32.totalorder %s76, %s78
      %p85 = scmp.eq.s32.totalorder %s31, 7
      %p86 = por %p84, %p85
      %p87 = scmp.ne.s32.totalorder %s78, %s79
      %p88 = scmp.eq.s32.totalorder %s31, 0
      %p89 = por %p87, %p88
      %p90 = scmp.ne.s32.totalorder %s78, %s79
      %p91 = scmp.eq.s32.totalorder %s32, 7
      %p92 = por %p90, %p91
      %p94 = scmp.ne.s32.totalorder %s79, %s93
      %p95 = scmp.eq.s32.totalorder %s32, 0
      %p96 = por %p94, %p95
      %s98 = sadd.s32 %s97, 1
      %p101 = scmp.eq.s32.totalorder %s26, 7
      %p102 = scmp.ne.s32.totalorder %s97, %s99
      %p103 = scmp.eq.s32.totalorder %s26, 0
      %p104 = por %p102, %p103
      %p105 = scmp.ne.s32.totalorder %s97, %s99
      %p106 = scmp.eq.s32.totalorder %s31, 7
      %p107 = por %p105, %p106
      %p108 = scmp.ne.s32.totalorder %s99, %s100
      %p109 = scmp.eq.s32.totalorder %s31, 0
      %p110 = por %p108, %p109
      %p111 = scmp.ne.s32.totalorder %s99, %s100
      %p112 = scmp.eq.s32.totalorder %s32, 7
      %p113 = por %p111, %p112
      %p115 = scmp.ne.s32.totalorder %s100, %s114
      %p116 = scmp.eq.s32.totalorder %s32, 0
      %p117 = por %p115, %p116
      %s119 = sadd.s32 %s118, 1
      %p122 = scmp.eq.s32.totalorder %s26, 7
      %p123 = scmp.ne.s32.totalorder %s118, %s120
      %p124 = scmp.eq.s32.totalorder %s26, 0
      %p125 = por %p123, %p124
      %p126 = scmp.ne.s32.totalorder %s118, %s120
      %p127 = scmp.eq.s32.totalorder %s31, 7
      %p128 = por %p126, %p127
      %p129 = scmp.ne.s32.totalorder %s120, %s121
      %p130 = scmp.eq.s32.totalorder %s31, 0
      %p131 = por %p129, %p130
      %p132 = scmp.ne.s32.totalorder %s120, %s121
      %p133 = scmp.eq.s32.totalorder %s32, 7
      %p134 = por %p132, %p133
      %p136 = scmp.ne.s32.totalorder %s121, %s135
      %p137 = scmp.eq.s32.totalorder %s32, 0
      %p138 = por %p136, %p137
      %s140 = sadd.s32 %s139, 1
      %p143 = scmp.eq.s32.totalorder %s26, 7
      %p144 = scmp.ne.s32.totalorder %s139, %s141
      %p145 = scmp.eq.s32.totalorder %s26, 0
      %p146 = por %p144, %p145
      %p147 = scmp.ne.s32.totalorder %s139, %s141
      %p148 = scmp.eq.s32.totalorder %s31, 7
      %p149 = por %p147, %p148
      %p150 = scmp.ne.s32.totalorder %s141, %s142
      %p151 = scmp.eq.s32.totalorder %s31, 0
      %p152 = por %p150, %p151
      %p153 = scmp.ne.s32.totalorder %s141, %s142
      %p154 = scmp.eq.s32.totalorder %s32, 7
      %p155 = por %p153, %p154
      %p157 = scmp.ne.s32.totalorder %s142, %s156
      %p158 = scmp.eq.s32.totalorder %s32, 0
      %p159 = por %p157, %p158
      %s160 = ssub.s32 %s26, %s33
      %p161 = scmp.eq.s32.totalorder %s160, 0
      %s163 = sadd.s32 %s162, 1
      %s164 = scalar_select %p161, %s162, %s163
      %p167 = pneg %p161
      %p168 = scmp.eq.s32.totalorder %s26, 7
      %p169 = por %p167, %p168
      %p170 = scmp.ne.s32.totalorder %s162, %s165
      %p171 = scmp.eq.s32.totalorder %s26, 0
      %p172 = por %p170, %p171
      %p173 = scmp.ne.s32.totalorder %s162, %s165
      %p174 = scmp.eq.s32.totalorder %s31, 7
      %p175 = por %p173, %p174
      %p176 = scmp.ne.s32.totalorder %s165, %s166
      %p177 = scmp.eq.s32.totalorder %s31, 0
      %p178 = por %p176, %p177
      %p179 = scmp.ne.s32.totalorder %s165, %s166
      %p180 = scmp.eq.s32.totalorder %s32, 7
      %p181 = por %p179, %p180
      %p183 = scmp.ne.s32.totalorder %s166, %s182
      %p184 = scmp.eq.s32.totalorder %s32, 0
      %p185 = por %p183, %p184
      %s187 = sadd.s32 %s186, 1
      %p190 = scmp.eq.s32.totalorder %s26, 7
      %p191 = scmp.ne.s32.totalorder %s186, %s188
      %p192 = scmp.eq.s32.totalorder %s26, 0
      %p193 = por %p191, %p192
      %p194 = scmp.ne.s32.totalorder %s186, %s188
      %p195 = scmp.eq.s32.totalorder %s31, 7
      %p196 = por %p194, %p195
      %p197 = scmp.ne.s32.totalorder %s188, %s189
      %p198 = scmp.eq.s32.totalorder %s31, 0
      %p199 = por %p197, %p198
      %p200 = scmp.ne.s32.totalorder %s188, %s189
      %p201 = scmp.eq.s32.totalorder %s32, 7
      %p202 = por %p200, %p201
      %p204 = scmp.ne.s32.totalorder %s189, %s203
      %p205 = scmp.eq.s32.totalorder %s32, 0
      %p206 = por %p204, %p205
      %p207 = scmp.le.s32.totalorder 1, %s26
      %p208 = scmp.lt.s32.totalorder %s26, 9
      %p209 = pnand %p207, %p208
      %p210 = pneg %p209
      // Predicated region
      $region9: #{_decode_call.1} parent=5 // pred_check
        _
      $region10: #{_decode_call.1} parent=5 // pred_check_branch
        %212 = sbr.rel (%p209) target = $region12
      $region11: #{_decode_call.1} parent=5 // pred_region
        %s213 = ssub.s32 %s26, 1
        // Predicated region
        $region13: #{_decode_call.1} parent=11 // pred_check
          %p214 = pneg %p47
        $region14: #{_decode_call.1} parent=11 // pred_check_branch
          %216 = sbr.rel (%p214) target = $region16
        $region15: #{_decode_call.1} parent=11 // pred_region
          %s218 = ssub.s32 256, 256
          %219 = vsyncadd [#allocation6], %s218
          %s220 = sshll.u32 [#allocation5], 4
          %s221 = int_to_ptr.vmem [resolvable:$true] %s220
          %226 = dma.hbm_to_vmem [thread:$0]  %s1, 256, %s221, [#allocation6], 128, 128, 8
        $region16: #{_decode_call.1} parent=11 // pred_fallthru
          _
        // Predicated region
        $region17: #{_decode_call.1} parent=11 // pred_check
          %p227 = pneg %p68
        $region18: #{_decode_call.1} parent=11 // pred_check_branch
          %229 = sbr.rel (%p227) target = $region20
        $region19: #{_decode_call.1} parent=11 // pred_region
          %s231 = ssub.s32 1024, 1024
          %232 = vsyncadd [#allocation9], %s231
          %s233 = sshll.u32 [#allocation8], 4
          %s234 = int_to_ptr.vmem [resolvable:$true] %s233
          %239 = dma.hbm_to_vmem [thread:$0]  %s2, 1024, %s234, [#allocation9], 64, 64, 4
        $region20: #{_decode_call.1} parent=11 // pred_fallthru
          _
        // Predicated region
        $region21: #{_decode_call.1} parent=11 // pred_check
          %p240 = pneg %p89
        $region22: #{_decode_call.1} parent=11 // pred_check_branch
          %242 = sbr.rel (%p240) target = $region24
        $region23: #{_decode_call.1} parent=11 // pred_region
          %s244 = ssub.s32 16384, 16384
          %245 = vsyncadd [#allocation9], %s244
          %s246 = sshll.u32 [#allocation10], 4
          %s247 = int_to_ptr.vmem [resolvable:$true] %s246
          %252 = dma.hbm_to_vmem [thread:$0]  %s3, 16384, %s247, [#allocation9], 256, 256, 16
        $region24: #{_decode_call.1} parent=11 // pred_fallthru
          _
        // Predicated region
        $region25: #{_decode_call.1} parent=11 // pred_check
          %p253 = pneg %p110
        $region26: #{_decode_call.1} parent=11 // pred_check_branch
          %255 = sbr.rel (%p253) target = $region28
        $region27: #{_decode_call.1} parent=11 // pred_region
          %s257 = ssub.s32 128, 128
          %258 = vsyncadd [#allocation12], %s257
          %s259 = sshll.u32 [#allocation11], 4
          %s260 = int_to_ptr.vmem [resolvable:$true] %s259
          %265 = dma.hbm_to_vmem [thread:$0]  %s4, 128, %s260, [#allocation12], 64, 64, 4
        $region28: #{_decode_call.1} parent=11 // pred_fallthru
          _
        // Predicated region
        $region29: #{_decode_call.1} parent=11 // pred_check
          %p266 = pneg %p131
        $region30: #{_decode_call.1} parent=11 // pred_check_branch
          %268 = sbr.rel (%p266) target = $region32
        $region31: #{_decode_call.1} parent=11 // pred_region
          %s270 = ssub.s32 1024, 1024
          %271 = vsyncadd [#allocation12], %s270
          %s272 = sshll.u32 [#allocation13], 4
          %s273 = int_to_ptr.vmem [resolvable:$true] %s272
          %278 = dma.hbm_to_vmem [thread:$0]  %s5, 1024, %s273, [#allocation12], 64, 64, 4
        $region32: #{_decode_call.1} parent=11 // pred_fallthru
          _
        // Predicated region
        $region33: #{_decode_call.1} parent=11 // pred_check
          %p279 = pneg %p152
        $region34: #{_decode_call.1} parent=11 // pred_check_branch
          %281 = sbr.rel (%p279) target = $region36
        $region35: #{_decode_call.1} parent=11 // pred_region
          _
        $region36: #{_decode_call.1} parent=11 // pred_fallthru
          _
      $region12: #{_decode_call.1} parent=5 // pred_fallthru
        _
      %p282 = scmp.lt.s32.totalorder %s26, 8
      // Predicated region
      $region37: #{_decode_call.1} parent=5 // pred_check
        %p283 = pneg %p282
      $region38: #{_decode_call.1} parent=5 // pred_check_branch
        %285 = sbr.rel (%p283) target = $region40
      $region39: #{_decode_call.1} parent=5 // pred_region
        _
      $region40: #{_decode_call.1} parent=5 // pred_fallthru
        _
      %p286 = scmp.le.s32.totalorder 1, %s26
      %p287 = scmp.lt.s32.totalorder %s26, 9
      %p288 = pnand %p286, %p287
      %p289 = pneg %p288
      // Predicated region
      $region41: #{_decode_call.1} parent=5 // pred_check
        _
      $region42: #{_decode_call.1} parent=5 // pred_check_branch
        %291 = sbr.rel (%p288) target = $region44
      $region43: #{_decode_call.1} parent=5 // pred_region
        %s292 = ssub.s32 %s26, 1
        // Predicated region
        $region45: #{_decode_call.1} parent=43 // pred_check
          %p293 = pneg %p47
        $region46: #{_decode_call.1} parent=43 // pred_check_branch
          %295 = sbr.rel (%p293) target = $region48
        $region47: #{_decode_call.1} parent=43 // pred_region
          %296 = dma.done [#allocation6], 256
        $region48: #{_decode_call.1} parent=43 // pred_fallthru
          _
        // Predicated region
        $region49: #{_decode_call.1} parent=43 // pred_check
          %p297 = pneg %p68
        $region50: #{_decode_call.1} parent=43 // pred_check_branch
          %299 = sbr.rel (%p297) target = $region52
        $region51: #{_decode_call.1} parent=43 // pred_region
          %300 = dma.done [#allocation9], 1024
        $region52: #{_decode_call.1} parent=43 // pred_fallthru
          _
        // Predicated region
        $region53: #{_decode_call.1} parent=43 // pred_check
          %p301 = pneg %p89
        $region54: #{_decode_call.1} parent=43 // pred_check_branch
          %303 = sbr.rel (%p301) target = $region56
        $region55: #{_decode_call.1} parent=43 // pred_region
          %304 = dma.done [#allocation9], 16384
        $region56: #{_decode_call.1} parent=43 // pred_fallthru
          _
        // Predicated region
        $region57: #{_decode_call.1} parent=43 // pred_check
          %p305 = pneg %p110
        $region58: #{_decode_call.1} parent=43 // pred_check_branch
          %307 = sbr.rel (%p305) target = $region60
        $region59: #{_decode_call.1} parent=43 // pred_region
          %308 = dma.done [#allocation12], 128
        $region60: #{_decode_call.1} parent=43 // pred_fallthru
          _
        // Predicated region
        $region61: #{_decode_call.1} parent=43 // pred_check
          %p309 = pneg %p131
        $region62: #{_decode_call.1} parent=43 // pred_check_branch
          %311 = sbr.rel (%p309) target = $region64
        $region63: #{_decode_call.1} parent=43 // pred_region
          %312 = dma.done [#allocation12], 1024
        $region64: #{_decode_call.1} parent=43 // pred_fallthru
          _
        %p313 = pneg %p47
        %p314 = pneg %p44
        %p315 = pneg %p68
        %p316 = pneg %p65
        %p317 = pneg %p89
        %p318 = pneg %p86
        %p319 = pneg %p110
        %p320 = pneg %p107
        %p321 = pneg %p131
        %p322 = pneg %p128
        %p323 = pneg %p152
        %p324 = pneg %p149
        %p325 = pneg %p178
        %p326 = pneg %p175
        %s327 = sand.u32 %s165, 1
        %s328 = scalar_lea.sflag [#allocation7], %s327
        %s329 = sand.u32 %s165, 1
        %s330 = smul.addr %s329, 8
        %s331 = scalar_lea.vmem [#allocation14], %s330
        %p332 = pneg %p199
        %p333 = pneg %p196
        %p335 = scmp.eq.s32.totalorder %s31, 0
        // Predicated region
        $region65: #{_decode_call.1} parent=43 // pred_check
          %p336 = pneg %p335
        $region66: #{_decode_call.1} parent=43 // pred_check_branch
          %338 = sbr.rel (%p336) target = $region68
        $region67: #{_decode_call.1} parent=43 // pred_region
          %v339 = vld [vmem:[#allocation5] sm:$0xff]
          %v340 = vld [vmem:[#allocation5 + $0x8] sm:$0xff]
          %341 = vst [vmem:[#allocation2] sm:$0xff] %v339
          %342 = vst [vmem:[#allocation2 + $0x8] sm:$0xff] %v340
        $region68: #{_decode_call.1} parent=43 // pred_fallthru
          _
        %v343 = vlaneseq
        %v344 = vshrl.u32 %v343, 7
        %v345 = vlaneseq
        %v346 = vand.u32 %v345, 127
        %s347 = smul.u32 %s31, 128
        %s348 = sld [smem:[#allocation4 + %s347]]
        %vm349 = vcmp.eq.s32.totalorder %v344, 0
        %v350 = vstv %s348
        %vm351 = vcmp.eq.s32.totalorder %v346, %v350
        %vm352 = vmand %vm349, %vm351
        %v353 = vsel %vm352, 1.0, 0.0
        %s354 = sadd.s32 %s347, 1
        %s355 = sld [smem:[#allocation4 + %s354]]
        %vm356 = vcmp.eq.s32.totalorder %v344, 1
        %v357 = vstv %s355
        %vm358 = vcmp.eq.s32.totalorder %v346, %v357
        %vm359 = vmand %vm356, %vm358
        %v360 = vsel %vm359, 1.0, %v353
        %s361 = sadd.s32 %s347, 2
        %s362 = sld [smem:[#allocation4 + %s361]]
        %vm363 = vcmp.eq.s32.totalorder %v344, 2
        %v364 = vstv %s362
        %vm365 = vcmp.eq.s32.totalorder %v346, %v364
        %vm366 = vmand %vm363, %vm365
        %v367 = vsel %vm366, 1.0, %v360
        %s368 = sadd.s32 %s347, 3
        %s369 = sld [smem:[#allocation4 + %s368]]
        %vm370 = vcmp.eq.s32.totalorder %v344, 3
        %v371 = vstv %s369
        %vm372 = vcmp.eq.s32.totalorder %v346, %v371
        %vm373 = vmand %vm370, %vm372
        %v374 = vsel %vm373, 1.0, %v367
        %s375 = sadd.s32 %s347, 4
        %s376 = sld [smem:[#allocation4 + %s375]]
        %vm377 = vcmp.eq.s32.totalorder %v344, 4
        %v378 = vstv %s376
        %vm379 = vcmp.eq.s32.totalorder %v346, %v378
        %vm380 = vmand %vm377, %vm379
        %v381 = vsel %vm380, 1.0, %v374
        %s382 = sadd.s32 %s347, 5
        %s383 = sld [smem:[#allocation4 + %s382]]
        %vm384 = vcmp.eq.s32.totalorder %v344, 5
        %v385 = vstv %s383
        %vm386 = vcmp.eq.s32.totalorder %v346, %v385
        %vm387 = vmand %vm384, %vm386
        %v388 = vsel %vm387, 1.0, %v381
        %s389 = sadd.s32 %s347, 6
        %s390 = sld [smem:[#allocation4 + %s389]]
        %vm391 = vcmp.eq.s32.totalorder %v344, 6
        %v392 = vstv %s390
        %vm393 = vcmp.eq.s32.totalorder %v346, %v392
        %vm394 = vmand %vm391, %vm393
        %v395 = vsel %vm394, 1.0, %v388
        %s396 = sadd.s32 %s347, 7
        %s397 = sld [smem:[#allocation4 + %s396]]
        %vm398 = vcmp.eq.s32.totalorder %v344, 7
        %v399 = vstv %s397
        %vm400 = vcmp.eq.s32.totalorder %v346, %v399
        %vm401 = vmand %vm398, %vm400
        %v402 = vsel %vm401, 1.0, %v395
        %v403 = vpack.c.bf16 %v402, %v402
        %v404 = vld [vmem:[#allocation8] sm:$0xf]
        %v405 = vld [vmem:[#allocation8 + $0x4] sm:$0xf]
        %v406 = vld [vmem:[#allocation8 + $0x8] sm:$0xf]
        %v407 = vld [vmem:[#allocation8 + $0xc] sm:$0xf]
        %v408 = vld [vmem:[#allocation8 + $0x10] sm:$0xf]
        %v409 = vld [vmem:[#allocation8 + $0x14] sm:$0xf]
        %v410 = vld [vmem:[#allocation8 + $0x18] sm:$0xf]
        %v411 = vld [vmem:[#allocation8 + $0x1c] sm:$0xf]
        %v412 = vld [vmem:[#allocation8 + $0x20] sm:$0xf]
        %v413 = vld [vmem:[#allocation8 + $0x24] sm:$0xf]
        %v414 = vld [vmem:[#allocation8 + $0x28] sm:$0xf]
        %v415 = vld [vmem:[#allocation8 + $0x2c] sm:$0xf]
        %v416 = vld [vmem:[#allocation8 + $0x30] sm:$0xf]
        %v417 = vld [vmem:[#allocation8 + $0x34] sm:$0xf]
        %v418 = vld [vmem:[#allocation8 + $0x38] sm:$0xf]
        %v419 = vld [vmem:[#allocation8 + $0x3c] sm:$0xf]
        %v436 = vunpack.c.l.b16 %v404
        %v437 = vunpack.c.l.b16 %v405
        %v438 = vunpack.c.l.b16 %v406
        %v439 = vunpack.c.l.b16 %v407
        %v440 = vunpack.c.l.b16 %v408
        %v441 = vunpack.c.l.b16 %v409
        %v442 = vunpack.c.l.b16 %v410
        %v443 = vunpack.c.l.b16 %v411
        %v444 = vunpack.c.l.b16 %v412
        %v445 = vunpack.c.l.b16 %v413
        %v446 = vunpack.c.l.b16 %v414
        %v447 = vunpack.c.l.b16 %v415
        %v448 = vunpack.c.l.b16 %v416
        %v449 = vunpack.c.l.b16 %v417
        %v450 = vunpack.c.l.b16 %v418
        %v451 = vunpack.c.l.b16 %v419
        %v452 = vpack.c.b16 %v437, %v436
        %v453 = vpack.c.b16 %v439, %v438
        %v454 = vpack.c.b16 %v441, %v440
        %v455 = vpack.c.b16 %v443, %v442
        %v456 = vpack.c.b16 %v445, %v444
        %v457 = vpack.c.b16 %v447, %v446
        %v458 = vpack.c.b16 %v449, %v448
        %v459 = vpack.c.b16 %v451, %v450
        %468 = vmatprep.subr.bf16.mxu0 0
        %469 = vmatpush1.bf16.msra.mxu0 %v459
        %470 = vmatprep.subr.bf16.mxu0 0
        %471 = vmatpush1.bf16.msra.mxu0 %v458
        %472 = vmatprep.subr.bf16.mxu0 0
        %473 = vmatpush1.bf16.msra.mxu0 %v457
        %474 = vmatprep.subr.bf16.mxu0 0
        %475 = vmatpush1.bf16.msra.mxu0 %v456
        %476 = vmatprep.subr.bf16.mxu0 0
        %477 = vmatpush1.bf16.msra.mxu0 %v455
        %478 = vmatprep.subr.bf16.mxu0 0
        %479 = vmatpush1.bf16.msra.mxu0 %v454
        %480 = vmatprep.subr.bf16.mxu0 0
        %481 = vmatpush1.bf16.msra.mxu0 %v453
        %482 = vmatprep.subr.bf16.mxu0 0
        %483 = vmatpush1.bf16.msra.mxu0 %v452
        %484 = vmatprep.subr.bf16.mxu0 0
        %485 = vmatpush2.bf16.msra.mxu0 0
        %486 = vmatprep.subr.bf16.mxu0 0
        %487 = vmatpush2.bf16.msra.mxu0 0
        %488 = vmatprep.subr.bf16.mxu0 0
        %489 = vmatpush2.bf16.msra.mxu0 0
        %490 = vmatprep.subr.bf16.mxu0 0
        %491 = vmatpush2.bf16.msra.mxu0 0
        %492 = vmatprep.subr.bf16.mxu0 0
        %493 = vmatpush2.bf16.msra.mxu0 0
        %494 = vmatprep.subr.bf16.mxu0 0
        %495 = vmatpush2.bf16.msra.mxu0 0
        %496 = vmatprep.subr.bf16.mxu0 0
        %497 = vmatpush2.bf16.msra.mxu0 0
        %498 = vmatprep.subr.bf16.mxu0 0
        %499 = vmatpush2.bf16.msra.mxu0 0
        %500 = vmatprep.mubr.bf16.mxu0 0
        %501 = vmatmul.mubr.bf16.gmra.mxu0 %v403
        %v502 = vpop.f32.mrf.mxu0
        %v503 = vadd.f32 0.0, %v502
        %v504 = vpop.f32.mrf.mxu0
        %v505 = vpop.f32.mrf.mxu0
        %v506 = vpop.f32.mrf.mxu0
        %507 = vdwg.mxu0
        %v508 = vld [vmem:[#allocation2] sm:$0xff]
        %v509 = vpack.c.bf16 %v503, %v503
        %v510 = vpack.c.bf16 %v508, %v508
        %v511 = vld [vmem:[#allocation10] sm:$0xff]
        %v512 = vld [vmem:[#allocation10 + $0x8] sm:$0xff]
        %v513 = vld [vmem:[#allocation10 + $0x10] sm:$0xff]
        %v514 = vld [vmem:[#allocation10 + $0x18] sm:$0xff]
        %v515 = vld [vmem:[#allocation10 + $0x20] sm:$0xff]
        %v516 = vld [vmem:[#allocation10 + $0x28] sm:$0xff]
        %v517 = vld [vmem:[#allocation10 + $0x30] sm:$0xff]
        %v518 = vld [vmem:[#allocation10 + $0x38] sm:$0xff]
        %v519 = vld [vmem:[#allocation10 + $0x40] sm:$0xff]
        %v520 = vld [vmem:[#allocation10 + $0x48] sm:$0xff]
        %v521 = vld [vmem:[#allocation10 + $0x50] sm:$0xff]
        %v522 = vld [vmem:[#allocation10 + $0x58] sm:$0xff]
        %v523 = vld [vmem:[#allocation10 + $0x60] sm:$0xff]
        %v524 = vld [vmem:[#allocation10 + $0x68] sm:$0xff]
        %v525 = vld [vmem:[#allocation10 + $0x70] sm:$0xff]
        %v526 = vld [vmem:[#allocation10 + $0x78] sm:$0xff]
        %v527 = vld [vmem:[#allocation10 + $0x80] sm:$0xff]
        %v528 = vld [vmem:[#allocation10 + $0x88] sm:$0xff]
        %v529 = vld [vmem:[#allocation10 + $0x90] sm:$0xff]
        %v530 = vld [vmem:[#allocation10 + $0x98] sm:$0xff]
        %v531 = vld [vmem:[#allocation10 + $0xa0] sm:$0xff]
        %v532 = vld [vmem:[#allocation10 + $0xa8] sm:$0xff]
        %v533 = vld [vmem:[#allocation10 + $0xb0] sm:$0xff]
        %v534 = vld [vmem:[#allocation10 + $0xb8] sm:$0xff]
        %v535 = vld [vmem:[#allocation10 + $0xc0] sm:$0xff]
        %v536 = vld [vmem:[#allocation10 + $0xc8] sm:$0xff]
        %v537 = vld [vmem:[#allocation10 + $0xd0] sm:$0xff]
        %v538 = vld [vmem:[#allocation10 + $0xd8] sm:$0xff]
        %v539 = vld [vmem:[#allocation10 + $0xe0] sm:$0xff]
        %v540 = vld [vmem:[#allocation10 + $0xe8] sm:$0xff]
        %v541 = vld [vmem:[#allocation10 + $0xf0] sm:$0xff]
        %v542 = vld [vmem:[#allocation10 + $0xf8] sm:$0xff]
        %v543 = vld [vmem:[#allocation10 + $0x100] sm:$0xff]
        %v544 = vld [vmem:[#allocation10 + $0x108] sm:$0xff]
        %v545 = vld [vmem:[#allocation10 + $0x110] sm:$0xff]
        %v546 = vld [vmem:[#allocation10 + $0x118] sm:$0xff]
        %v547 = vld [vmem:[#allocation10 + $0x120] sm:$0xff]
        %v548 = vld [vmem:[#allocation10 + $0x128] sm:$0xff]
        %v549 = vld [vmem:[#allocation10 + $0x130] sm:$0xff]
        %v550 = vld [vmem:[#allocation10 + $0x138] sm:$0xff]
        %v551 = vld [vmem:[#allocation10 + $0x140] sm:$0xff]
        %v552 = vld [vmem:[#allocation10 + $0x148] sm:$0xff]
        %v553 = vld [vmem:[#allocation10 + $0x150] sm:$0xff]
        %v554 = vld [vmem:[#allocation10 + $0x158] sm:$0xff]
        %v555 = vld [vmem:[#allocation10 + $0x160] sm:$0xff]
        %v556 = vld [vmem:[#allocation10 + $0x168] sm:$0xff]
        %v557 = vld [vmem:[#allocation10 + $0x170] sm:$0xff]
        %v558 = vld [vmem:[#allocation10 + $0x178] sm:$0xff]
        %v559 = vld [vmem:[#allocation10 + $0x180] sm:$0xff]
        %v560 = vld [vmem:[#allocation10 + $0x188] sm:$0xff]
        %v561 = vld [vmem:[#allocation10 + $0x190] sm:$0xff]
        %v562 = vld [vmem:[#allocation10 + $0x198] sm:$0xff]
        %v563 = vld [vmem:[#allocation10 + $0x1a0] sm:$0xff]
        %v564 = vld [vmem:[#allocation10 + $0x1a8] sm:$0xff]
        %v565 = vld [vmem:[#allocation10 + $0x1b0] sm:$0xff]
        %v566 = vld [vmem:[#allocation10 + $0x1b8] sm:$0xff]
        %v567 = vld [vmem:[#allocation10 + $0x1c0] sm:$0xff]
        %v568 = vld [vmem:[#allocation10 + $0x1c8] sm:$0xff]
        %v569 = vld [vmem:[#allocation10 + $0x1d0] sm:$0xff]
        %v570 = vld [vmem:[#allocation10 + $0x1d8] sm:$0xff]
        %v571 = vld [vmem:[#allocation10 + $0x1e0] sm:$0xff]
        %v572 = vld [vmem:[#allocation10 + $0x1e8] sm:$0xff]
        %v573 = vld [vmem:[#allocation10 + $0x1f0] sm:$0xff]
        %v574 = vld [vmem:[#allocation10 + $0x1f8] sm:$0xff]
        %v575 = vld [vmem:[#allocation11] sm:$0xf]
        %v577 = vlaneseq
        %v578 = vshrl.u32 %v577, 7
        %v579 = vsub.s32 0, %v578
        %v580 = vrot.slane %v575, %v579
        %v581 = vlaneseq
        %v582 = vshrl.u32 %v581, 7
        %v583 = vsub.s32 1, %v582
        %v584 = vrot.slane %v575, %v583
        %v585 = vlaneseq
        %v586 = vshrl.u32 %v585, 7
        %v587 = vsub.s32 2, %v586
        %v588 = vrot.slane %v575, %v587
        %v589 = vlaneseq
        %v590 = vshrl.u32 %v589, 7
        %v591 = vsub.s32 3, %v590
        %v592 = vrot.slane %v575, %v591
        %v661 = vunpack.c.l.b16 %v511
        %v662 = vunpack.c.h.b16 %v511
        %v663 = vunpack.c.l.b16 %v512
        %v664 = vunpack.c.h.b16 %v512
        %v665 = vunpack.c.l.b16 %v513
        %v666 = vunpack.c.h.b16 %v513
        %v667 = vunpack.c.l.b16 %v514
        %v668 = vunpack.c.h.b16 %v514
        %v669 = vunpack.c.l.b16 %v515
        %v670 = vunpack.c.h.b16 %v515
        %v671 = vunpack.c.l.b16 %v516
        %v672 = vunpack.c.h.b16 %v516
        %v673 = vunpack.c.l.b16 %v517
        %v674 = vunpack.c.h.b16 %v517
        %v675 = vunpack.c.l.b16 %v518
        %v676 = vunpack.c.h.b16 %v518
        %v677 = vunpack.c.l.b16 %v519
        %v678 = vunpack.c.h.b16 %v519
        %v679 = vunpack.c.l.b16 %v520
        %v680 = vunpack.c.h.b16 %v520
        %v681 = vunpack.c.l.b16 %v521
        %v682 = vunpack.c.h.b16 %v521
        %v683 = vunpack.c.l.b16 %v522
        %v684 = vunpack.c.h.b16 %v522
        %v685 = vunpack.c.l.b16 %v523
        %v686 = vunpack.c.h.b16 %v523
        %v687 = vunpack.c.l.b16 %v524
        %v688 = vunpack.c.h.b16 %v524
        %v689 = vunpack.c.l.b16 %v525
        %v690 = vunpack.c.h.b16 %v525
        %v691 = vunpack.c.l.b16 %v526
        %v692 = vunpack.c.h.b16 %v526
        %v693 = vunpack.c.l.b16 %v527
        %v694 = vunpack.c.h.b16 %v527
        %v695 = vunpack.c.l.b16 %v528
        %v696 = vunpack.c.h.b16 %v528
        %v697 = vunpack.c.l.b16 %v529
        %v698 = vunpack.c.h.b16 %v529
        %v699 = vunpack.c.l.b16 %v530
        %v700 = vunpack.c.h.b16 %v530
        %v701 = vunpack.c.l.b16 %v531
        %v702 = vunpack.c.h.b16 %v531
        %v703 = vunpack.c.l.b16 %v532
        %v704 = vunpack.c.h.b16 %v532
        %v705 = vunpack.c.l.b16 %v533
        %v706 = vunpack.c.h.b16 %v533
        %v707 = vunpack.c.l.b16 %v534
        %v708 = vunpack.c.h.b16 %v534
        %v709 = vunpack.c.l.b16 %v535
        %v710 = vunpack.c.h.b16 %v535
        %v711 = vunpack.c.l.b16 %v536
        %v712 = vunpack.c.h.b16 %v536
        %v713 = vunpack.c.l.b16 %v537
        %v714 = vunpack.c.h.b16 %v537
        %v715 = vunpack.c.l.b16 %v538
        %v716 = vunpack.c.h.b16 %v538
        %v717 = vunpack.c.l.b16 %v539
        %v718 = vunpack.c.h.b16 %v539
        %v719 = vunpack.c.l.b16 %v540
        %v720 = vunpack.c.h.b16 %v540
        %v721 = vunpack.c.l.b16 %v541
        %v722 = vunpack.c.h.b16 %v541
        %v723 = vunpack.c.l.b16 %v542
        %v724 = vunpack.c.h.b16 %v542
        %v725 = vunpack.c.l.b16 %v543
        %v726 = vunpack.c.h.b16 %v543
        %v727 = vunpack.c.l.b16 %v544
        %v728 = vunpack.c.h.b16 %v544
        %v729 = vunpack.c.l.b16 %v545
        %v730 = vunpack.c.h.b16 %v545
        %v731 = vunpack.c.l.b16 %v546
        %v732 = vunpack.c.h.b16 %v546
        %v733 = vunpack.c.l.b16 %v547
        %v734 = vunpack.c.h.b16 %v547
        %v735 = vunpack.c.l.b16 %v548
        %v736 = vunpack.c.h.b16 %v548
        %v737 = vunpack.c.l.b16 %v549
        %v738 = vunpack.c.h.b16 %v549
        %v739 = vunpack.c.l.b16 %v550
        %v740 = vunpack.c.h.b16 %v550
        %v741 = vunpack.c.l.b16 %v551
        %v742 = vunpack.c.h.b16 %v551
        %v743 = vunpack.c.l.b16 %v552
        %v744 = vunpack.c.h.b16 %v552
        %v745 = vunpack.c.l.b16 %v553
        %v746 = vunpack.c.h.b16 %v553
        %v747 = vunpack.c.l.b16 %v554
        %v748 = vunpack.c.h.b16 %v554
        %v749 = vunpack.c.l.b16 %v555
        %v750 = vunpack.c.h.b16 %v555
        %v751 = vunpack.c.l.b16 %v556
        %v752 = vunpack.c.h.b16 %v556
        %v753 = vunpack.c.l.b16 %v557
        %v754 = vunpack.c.h.b16 %v557
        %v755 = vunpack.c.l.b16 %v558
        %v756 = vunpack.c.h.b16 %v558
        %v757 = vunpack.c.l.b16 %v559
        %v758 = vunpack.c.h.b16 %v559
        %v759 = vunpack.c.l.b16 %v560
        %v760 = vunpack.c.h.b16 %v560
        %v761 = vunpack.c.l.b16 %v561
        %v762 = vunpack.c.h.b16 %v561
        %v763 = vunpack.c.l.b16 %v562
        %v764 = vunpack.c.h.b16 %v562
        %v765 = vunpack.c.l.b16 %v563
        %v766 = vunpack.c.h.b16 %v563
        %v767 = vunpack.c.l.b16 %v564
        %v768 = vunpack.c.h.b16 %v564
        %v769 = vunpack.c.l.b16 %v565
        %v770 = vunpack.c.h.b16 %v565
        %v771 = vunpack.c.l.b16 %v566
        %v772 = vunpack.c.h.b16 %v566
        %v773 = vunpack.c.l.b16 %v567
        %v774 = vunpack.c.h.b16 %v567
        %v775 = vunpack.c.l.b16 %v568
        %v776 = vunpack.c.h.b16 %v568
        %v777 = vunpack.c.l.b16 %v569
        %v778 = vunpack.c.h.b16 %v569
        %v779 = vunpack.c.l.b16 %v570
        %v780 = vunpack.c.h.b16 %v570
        %v781 = vunpack.c.l.b16 %v571
        %v782 = vunpack.c.h.b16 %v571
        %v783 = vunpack.c.l.b16 %v572
        %v784 = vunpack.c.h.b16 %v572
        %v785 = vunpack.c.l.b16 %v573
        %v786 = vunpack.c.h.b16 %v573
        %v787 = vunpack.c.l.b16 %v574
        %v788 = vunpack.c.h.b16 %v574
        %v789 = vpack.c.b16 %v665, %v661
        %v790 = vpack.c.b16 %v666, %v662
        %v791 = vpack.c.b16 %v667, %v663
        %v792 = vpack.c.b16 %v668, %v664
        %v793 = vpack.c.b16 %v673, %v669
        %v794 = vpack.c.b16 %v674, %v670
        %v795 = vpack.c.b16 %v675, %v671
        %v796 = vpack.c.b16 %v676, %v672
        %v797 = vpack.c.b16 %v681, %v677
        %v798 = vpack.c.b16 %v682, %v678
        %v799 = vpack.c.b16 %v683, %v679
        %v800 = vpack.c.b16 %v684, %v680
        %v801 = vpack.c.b16 %v689, %v685
        %v802 = vpack.c.b16 %v690, %v686
        %v803 = vpack.c.b16 %v691, %v687
        %v804 = vpack.c.b16 %v692, %v688
        %v805 = vpack.c.b16 %v697, %v693
        %v806 = vpack.c.b16 %v698, %v694
        %v807 = vpack.c.b16 %v699, %v695
        %v808 = vpack.c.b16 %v700, %v696
        %v809 = vpack.c.b16 %v705, %v701
        %v810 = vpack.c.b16 %v706, %v702
        %v811 = vpack.c.b16 %v707, %v703
        %v812 = vpack.c.b16 %v708, %v704
        %v813 = vpack.c.b16 %v713, %v709
        %v814 = vpack.c.b16 %v714, %v710
        %v815 = vpack.c.b16 %v715, %v711
        %v816 = vpack.c.b16 %v716, %v712
        %v817 = vpack.c.b16 %v721, %v717
        %v818 = vpack.c.b16 %v722, %v718
        %v819 = vpack.c.b16 %v723, %v719
        %v820 = vpack.c.b16 %v724, %v720
        %v821 = vpack.c.b16 %v729, %v725
        %v822 = vpack.c.b16 %v730, %v726
        %v823 = vpack.c.b16 %v731, %v727
        %v824 = vpack.c.b16 %v732, %v728
        %v825 = vpack.c.b16 %v737, %v733
        %v826 = vpack.c.b16 %v738, %v734
        %v827 = vpack.c.b16 %v739, %v735
        %v828 = vpack.c.b16 %v740, %v736
        %v829 = vpack.c.b16 %v745, %v741
        %v830 = vpack.c.b16 %v746, %v742
        %v831 = vpack.c.b16 %v747, %v743
        %v832 = vpack.c.b16 %v748, %v744
        %v833 = vpack.c.b16 %v753, %v749
        %v834 = vpack.c.b16 %v754, %v750
        %v835 = vpack.c.b16 %v755, %v751
        %v836 = vpack.c.b16 %v756, %v752
        %v837 = vpack.c.b16 %v761, %v757
        %v838 = vpack.c.b16 %v762, %v758
        %v839 = vpack.c.b16 %v763, %v759
        %v840 = vpack.c.b16 %v764, %v760
        %v841 = vpack.c.b16 %v769, %v765
        %v842 = vpack.c.b16 %v770, %v766
        %v843 = vpack.c.b16 %v771, %v767
        %v844 = vpack.c.b16 %v772, %v768
        %v845 = vpack.c.b16 %v777, %v773
        %v846 = vpack.c.b16 %v778, %v774
        %v847 = vpack.c.b16 %v779, %v775
        %v848 = vpack.c.b16 %v780, %v776
        %v849 = vpack.c.b16 %v785, %v781
        %v850 = vpack.c.b16 %v786, %v782
        %v851 = vpack.c.b16 %v787, %v783
        %v852 = vpack.c.b16 %v788, %v784
        %917 = vmatprep.subr.bf16.mxu0 %v818
        %918 = vmatpush1.bf16.msra.mxu0 %v817
        %919 = vmatprep.subr.bf16.mxu0 %v814
        %920 = vmatpush1.bf16.msra.mxu0 %v813
        %921 = vmatprep.subr.bf16.mxu0 %v810
        %922 = vmatpush1.bf16.msra.mxu0 %v809
        %923 = vmatprep.subr.bf16.mxu0 %v806
        %924 = vmatpush1.bf16.msra.mxu0 %v805
        %925 = vmatprep.subr.bf16.mxu0 %v802
        %926 = vmatpush1.bf16.msra.mxu0 %v801
        %927 = vmatprep.subr.bf16.mxu0 %v798
        %928 = vmatpush1.bf16.msra.mxu0 %v797
        %929 = vmatprep.subr.bf16.mxu0 %v794
        %930 = vmatpush1.bf16.msra.mxu0 %v793
        %931 = vmatprep.subr.bf16.mxu0 %v790
        %932 = vmatpush1.bf16.msra.mxu0 %v789
        %933 = vmatprep.subr.bf16.mxu0 %v850
        %934 = vmatpush2.bf16.msra.mxu0 %v849
        %935 = vmatprep.subr.bf16.mxu0 %v846
        %936 = vmatpush2.bf16.msra.mxu0 %v845
        %937 = vmatprep.subr.bf16.mxu0 %v842
        %938 = vmatpush2.bf16.msra.mxu0 %v841
        %939 = vmatprep.subr.bf16.mxu0 %v838
        %940 = vmatpush2.bf16.msra.mxu0 %v837
        %941 = vmatprep.subr.bf16.mxu0 %v834
        %942 = vmatpush2.bf16.msra.mxu0 %v833
        %943 = vmatprep.subr.bf16.mxu0 %v830
        %944 = vmatpush2.bf16.msra.mxu0 %v829
        %945 = vmatprep.subr.bf16.mxu0 %v826
        %946 = vmatpush2.bf16.msra.mxu0 %v825
        %947 = vmatprep.subr.bf16.mxu0 %v822
        %948 = vmatpush2.bf16.msra.mxu0 %v821
        %949 = vmatprep.mubr.bf16.mxu0 %v510
        %950 = vmatmul.mubr.bf16.gmra.mxu0 %v509
        %v951 = vpop.f32.mrf.mxu0
        %v952 = vadd.f32 %v580, %v951
        %v953 = vpop.f32.mrf.mxu0
        %v954 = vadd.f32 %v584, %v953
        %v955 = vpop.f32.mrf.mxu0
        %v956 = vpop.f32.mrf.mxu0
        %957 = vdwg.mxu0
        %958 = vmatprep.subr.bf16.mxu0 %v820
        %959 = vmatpush1.bf16.msra.mxu0 %v819
        %960 = vmatprep.subr.bf16.mxu0 %v816
        %961 = vmatpush1.bf16.msra.mxu0 %v815
        %962 = vmatprep.subr.bf16.mxu0 %v812
        %963 = vmatpush1.bf16.msra.mxu0 %v811
        %964 = vmatprep.subr.bf16.mxu0 %v808
        %965 = vmatpush1.bf16.msra.mxu0 %v807
        %966 = vmatprep.subr.bf16.mxu0 %v804
        %967 = vmatpush1.bf16.msra.mxu0 %v803
        %968 = vmatprep.subr.bf16.mxu0 %v800
        %969 = vmatpush1.bf16.msra.mxu0 %v799
        %970 = vmatprep.subr.bf16.mxu0 %v796
        %971 = vmatpush1.bf16.msra.mxu0 %v795
        %972 = vmatprep.subr.bf16.mxu0 %v792
        %973 = vmatpush1.bf16.msra.mxu0 %v791
        %974 = vmatprep.subr.bf16.mxu0 %v852
        %975 = vmatpush2.bf16.msra.mxu0 %v851
        %976 = vmatprep.subr.bf16.mxu0 %v848
        %977 = vmatpush2.bf16.msra.mxu0 %v847
        %978 = vmatprep.subr.bf16.mxu0 %v844
        %979 = vmatpush2.bf16.msra.mxu0 %v843
        %980 = vmatprep.subr.bf16.mxu0 %v840
        %981 = vmatpush2.bf16.msra.mxu0 %v839
        %982 = vmatprep.subr.bf16.mxu0 %v836
        %983 = vmatpush2.bf16.msra.mxu0 %v835
        %984 = vmatprep.subr.bf16.mxu0 %v832
        %985 = vmatpush2.bf16.msra.mxu0 %v831
        %986 = vmatprep.subr.bf16.mxu0 %v828
        %987 = vmatpush2.bf16.msra.mxu0 %v827
        %988 = vmatprep.subr.bf16.mxu0 %v824
        %989 = vmatpush2.bf16.msra.mxu0 %v823
        %990 = vmatprep.mubr.bf16.mxu0 %v510
        %991 = vmatmul.mubr.bf16.gmra.mxu0 %v509
        %v992 = vpop.f32.mrf.mxu0
        %v993 = vadd.f32 %v588, %v992
        %v994 = vpop.f32.mrf.mxu0
        %v995 = vadd.f32 %v592, %v994
        %v996 = vpop.f32.mrf.mxu0
        %v997 = vpop.f32.mrf.mxu0
        %998 = vdwg.mxu0
        %v999 = vxor.u32 %v952, 2147483648
        %v1000 = vmul.f32 %v999, 1.442695
        %v1001 = vpow.pop %v1000
        %v1002 = vadd.f32 %v1001, 1.0
        %v1003 = vrcp.pop %v1002
        %v1004 = vmul.f32 1.0, %v1003
        %v1005 = vxor.u32 %v954, 2147483648
        %v1006 = vmul.f32 %v1005, 1.442695
        %v1007 = vpow.pop %v1006
        %v1008 = vadd.f32 %v1007, 1.0
        %v1009 = vrcp.pop %v1008
        %v1010 = vmul.f32 1.0, %v1009
        %v1011 = vmul.f32 %v1004, %v995
        %v1012 = vadd.f32 %v993, %v1011
        %v1013 = vtanh.pop %v1012
        %v1014 = vsub.f32 1.0, %v1010
        %v1015 = vmul.f32 %v1014, %v1013
        %v1016 = vmul.f32 %v1010, %v508
        %v1017 = vadd.f32 %v1015, %v1016
        %1018 = vst [vmem:[#allocation2] sm:$0xff] %v1017
        %s1019 = scalar_lea.vmem [#allocation2], 8
        %v1020 = vld [vmem:[%s1019] sm:$0xff]
        %v1021 = vpack.c.bf16 %v1017, %v1017
        %v1022 = vpack.c.bf16 %v1020, %v1020
        %s1023 = scalar_lea.vmem [#allocation10], 512
        %v1024 = vld [vmem:[%s1023] sm:$0xff]
        %v1025 = vld [vmem:[%s1023 + $0x8] sm:$0xff]
        %v1026 = vld [vmem:[%s1023 + $0x10] sm:$0xff]
        %v1027 = vld [vmem:[%s1023 + $0x18] sm:$0xff]
        %v1028 = vld [vmem:[%s1023 + $0x20] sm:$0xff]
        %v1029 = vld [vmem:[%s1023 + $0x28] sm:$0xff]
        %v1030 = vld [vmem:[%s1023 + $0x30] sm:$0xff]
        %v1031 = vld [vmem:[%s1023 + $0x38] sm:$0xff]
        %v1032 = vld [vmem:[%s1023 + $0x40] sm:$0xff]
        %v1033 = vld [vmem:[%s1023 + $0x48] sm:$0xff]
        %v1034 = vld [vmem:[%s1023 + $0x50] sm:$0xff]
        %v1035 = vld [vmem:[%s1023 + $0x58] sm:$0xff]
        %v1036 = vld [vmem:[%s1023 + $0x60] sm:$0xff]
        %v1037 = vld [vmem:[%s1023 + $0x68] sm:$0xff]
        %v1038 = vld [vmem:[%s1023 + $0x70] sm:$0xff]
        %v1039 = vld [vmem:[%s1023 + $0x78] sm:$0xff]
        %v1040 = vld [vmem:[%s1023 + $0x80] sm:$0xff]
        %v1041 = vld [vmem:[%s1023 + $0x88] sm:$0xff]
        %v1042 = vld [vmem:[%s1023 + $0x90] sm:$0xff]
        %v1043 = vld [vmem:[%s1023 + $0x98] sm:$0xff]
        %v1044 = vld [vmem:[%s1023 + $0xa0] sm:$0xff]
        %v1045 = vld [vmem:[%s1023 + $0xa8] sm:$0xff]
        %v1046 = vld [vmem:[%s1023 + $0xb0] sm:$0xff]
        %v1047 = vld [vmem:[%s1023 + $0xb8] sm:$0xff]
        %v1048 = vld [vmem:[%s1023 + $0xc0] sm:$0xff]
        %v1049 = vld [vmem:[%s1023 + $0xc8] sm:$0xff]
        %v1050 = vld [vmem:[%s1023 + $0xd0] sm:$0xff]
        %v1051 = vld [vmem:[%s1023 + $0xd8] sm:$0xff]
        %v1052 = vld [vmem:[%s1023 + $0xe0] sm:$0xff]
        %v1053 = vld [vmem:[%s1023 + $0xe8] sm:$0xff]
        %v1054 = vld [vmem:[%s1023 + $0xf0] sm:$0xff]
        %v1055 = vld [vmem:[%s1023 + $0xf8] sm:$0xff]
        %v1056 = vld [vmem:[%s1023 + $0x100] sm:$0xff]
        %v1057 = vld [vmem:[%s1023 + $0x108] sm:$0xff]
        %v1058 = vld [vmem:[%s1023 + $0x110] sm:$0xff]
        %v1059 = vld [vmem:[%s1023 + $0x118] sm:$0xff]
        %v1060 = vld [vmem:[%s1023 + $0x120] sm:$0xff]
        %v1061 = vld [vmem:[%s1023 + $0x128] sm:$0xff]
        %v1062 = vld [vmem:[%s1023 + $0x130] sm:$0xff]
        %v1063 = vld [vmem:[%s1023 + $0x138] sm:$0xff]
        %v1064 = vld [vmem:[%s1023 + $0x140] sm:$0xff]
        %v1065 = vld [vmem:[%s1023 + $0x148] sm:$0xff]
        %v1066 = vld [vmem:[%s1023 + $0x150] sm:$0xff]
        %v1067 = vld [vmem:[%s1023 + $0x158] sm:$0xff]
        %v1068 = vld [vmem:[%s1023 + $0x160] sm:$0xff]
        %v1069 = vld [vmem:[%s1023 + $0x168] sm:$0xff]
        %v1070 = vld [vmem:[%s1023 + $0x170] sm:$0xff]
        %v1071 = vld [vmem:[%s1023 + $0x178] sm:$0xff]
        %v1072 = vld [vmem:[%s1023 + $0x180] sm:$0xff]
        %v1073 = vld [vmem:[%s1023 + $0x188] sm:$0xff]
        %v1074 = vld [vmem:[%s1023 + $0x190] sm:$0xff]
        %v1075 = vld [vmem:[%s1023 + $0x198] sm:$0xff]
        %v1076 = vld [vmem:[%s1023 + $0x1a0] sm:$0xff]
        %v1077 = vld [vmem:[%s1023 + $0x1a8] sm:$0xff]
        %v1078 = vld [vmem:[%s1023 + $0x1b0] sm:$0xff]
        %v1079 = vld [vmem:[%s1023 + $0x1b8] sm:$0xff]
        %v1080 = vld [vmem:[%s1023 + $0x1c0] sm:$0xff]
        %v1081 = vld [vmem:[%s1023 + $0x1c8] sm:$0xff]
        %v1082 = vld [vmem:[%s1023 + $0x1d0] sm:$0xff]
        %v1083 = vld [vmem:[%s1023 + $0x1d8] sm:$0xff]
        %v1084 = vld [vmem:[%s1023 + $0x1e0] sm:$0xff]
        %v1085 = vld [vmem:[%s1023 + $0x1e8] sm:$0xff]
        %v1086 = vld [vmem:[%s1023 + $0x1f0] sm:$0xff]
        %v1087 = vld [vmem:[%s1023 + $0x1f8] sm:$0xff]
        %s1088 = scalar_lea.vmem [#allocation11], 4
        %v1089 = vld [vmem:[%s1088] sm:$0xf]
        %v1091 = vlaneseq
        %v1092 = vshrl.u32 %v1091, 7
        %v1093 = vsub.s32 0, %v1092
        %v1094 = vrot.slane %v1089, %v1093
        %v1095 = vlaneseq
        %v1096 = vshrl.u32 %v1095, 7
        %v1097 = vsub.s32 1, %v1096
        %v1098 = vrot.slane %v1089, %v1097
        %v1099 = vlaneseq
        %v1100 = vshrl.u32 %v1099, 7
        %v1101 = vsub.s32 2, %v1100
        %v1102 = vrot.slane %v1089, %v1101
        %v1103 = vlaneseq
        %v1104 = vshrl.u32 %v1103, 7
        %v1105 = vsub.s32 3, %v1104
        %v1106 = vrot.slane %v1089, %v1105
        %v1175 = vunpack.c.l.b16 %v1024
        %v1176 = vunpack.c.h.b16 %v1024
        %v1177 = vunpack.c.l.b16 %v1025
        %v1178 = vunpack.c.h.b16 %v1025
        %v1179 = vunpack.c.l.b16 %v1026
        %v1180 = vunpack.c.h.b16 %v1026
        %v1181 = vunpack.c.l.b16 %v1027
        %v1182 = vunpack.c.h.b16 %v1027
        %v1183 = vunpack.c.l.b16 %v1028
        %v1184 = vunpack.c.h.b16 %v1028
        %v1185 = vunpack.c.l.b16 %v1029
        %v1186 = vunpack.c.h.b16 %v1029
        %v1187 = vunpack.c.l.b16 %v1030
        %v1188 = vunpack.c.h.b16 %v1030
        %v1189 = vunpack.c.l.b16 %v1031
        %v1190 = vunpack.c.h.b16 %v1031
        %v1191 = vunpack.c.l.b16 %v1032
        %v1192 = vunpack.c.h.b16 %v1032
        %v1193 = vunpack.c.l.b16 %v1033
        %v1194 = vunpack.c.h.b16 %v1033
        %v1195 = vunpack.c.l.b16 %v1034
        %v1196 = vunpack.c.h.b16 %v1034
        %v1197 = vunpack.c.l.b16 %v1035
        %v1198 = vunpack.c.h.b16 %v1035
        %v1199 = vunpack.c.l.b16 %v1036
        %v1200 = vunpack.c.h.b16 %v1036
        %v1201 = vunpack.c.l.b16 %v1037
        %v1202 = vunpack.c.h.b16 %v1037
        %v1203 = vunpack.c.l.b16 %v1038
        %v1204 = vunpack.c.h.b16 %v1038
        %v1205 = vunpack.c.l.b16 %v1039
        %v1206 = vunpack.c.h.b16 %v1039
        %v1207 = vunpack.c.l.b16 %v1040
        %v1208 = vunpack.c.h.b16 %v1040
        %v1209 = vunpack.c.l.b16 %v1041
        %v1210 = vunpack.c.h.b16 %v1041
        %v1211 = vunpack.c.l.b16 %v1042
        %v1212 = vunpack.c.h.b16 %v1042
        %v1213 = vunpack.c.l.b16 %v1043
        %v1214 = vunpack.c.h.b16 %v1043
        %v1215 = vunpack.c.l.b16 %v1044
        %v1216 = vunpack.c.h.b16 %v1044
        %v1217 = vunpack.c.l.b16 %v1045
        %v1218 = vunpack.c.h.b16 %v1045
        %v1219 = vunpack.c.l.b16 %v1046
        %v1220 = vunpack.c.h.b16 %v1046
        %v1221 = vunpack.c.l.b16 %v1047
        %v1222 = vunpack.c.h.b16 %v1047
        %v1223 = vunpack.c.l.b16 %v1048
        %v1224 = vunpack.c.h.b16 %v1048
        %v1225 = vunpack.c.l.b16 %v1049
        %v1226 = vunpack.c.h.b16 %v1049
        %v1227 = vunpack.c.l.b16 %v1050
        %v1228 = vunpack.c.h.b16 %v1050
        %v1229 = vunpack.c.l.b16 %v1051
        %v1230 = vunpack.c.h.b16 %v1051
        %v1231 = vunpack.c.l.b16 %v1052
        %v1232 = vunpack.c.h.b16 %v1052
        %v1233 = vunpack.c.l.b16 %v1053
        %v1234 = vunpack.c.h.b16 %v1053
        %v1235 = vunpack.c.l.b16 %v1054
        %v1236 = vunpack.c.h.b16 %v1054
        %v1237 = vunpack.c.l.b16 %v1055
        %v1238 = vunpack.c.h.b16 %v1055
        %v1239 = vunpack.c.l.b16 %v1056
        %v1240 = vunpack.c.h.b16 %v1056
        %v1241 = vunpack.c.l.b16 %v1057
        %v1242 = vunpack.c.h.b16 %v1057
        %v1243 = vunpack.c.l.b16 %v1058
        %v1244 = vunpack.c.h.b16 %v1058
        %v1245 = vunpack.c.l.b16 %v1059
        %v1246 = vunpack.c.h.b16 %v1059
        %v1247 = vunpack.c.l.b16 %v1060
        %v1248 = vunpack.c.h.b16 %v1060
        %v1249 = vunpack.c.l.b16 %v1061
        %v1250 = vunpack.c.h.b16 %v1061
        %v1251 = vunpack.c.l.b16 %v1062
        %v1252 = vunpack.c.h.b16 %v1062
        %v1253 = vunpack.c.l.b16 %v1063
        %v1254 = vunpack.c.h.b16 %v1063
        %v1255 = vunpack.c.l.b16 %v1064
        %v1256 = vunpack.c.h.b16 %v1064
        %v1257 = vunpack.c.l.b16 %v1065
        %v1258 = vunpack.c.h.b16 %v1065
        %v1259 = vunpack.c.l.b16 %v1066
        %v1260 = vunpack.c.h.b16 %v1066
        %v1261 = vunpack.c.l.b16 %v1067
        %v1262 = vunpack.c.h.b16 %v1067
        %v1263 = vunpack.c.l.b16 %v1068
        %v1264 = vunpack.c.h.b16 %v1068
        %v1265 = vunpack.c.l.b16 %v1069
        %v1266 = vunpack.c.h.b16 %v1069
        %v1267 = vunpack.c.l.b16 %v1070
        %v1268 = vunpack.c.h.b16 %v1070
        %v1269 = vunpack.c.l.b16 %v1071
        %v1270 = vunpack.c.h.b16 %v1071
        %v1271 = vunpack.c.l.b16 %v1072
        %v1272 = vunpack.c.h.b16 %v1072
        %v1273 = vunpack.c.l.b16 %v1073
        %v1274 = vunpack.c.h.b16 %v1073
        %v1275 = vunpack.c.l.b16 %v1074
        %v1276 = vunpack.c.h.b16 %v1074
        %v1277 = vunpack.c.l.b16 %v1075
        %v1278 = vunpack.c.h.b16 %v1075
        %v1279 = vunpack.c.l.b16 %v1076
        %v1280 = vunpack.c.h.b16 %v1076
        %v1281 = vunpack.c.l.b16 %v1077
        %v1282 = vunpack.c.h.b16 %v1077
        %v1283 = vunpack.c.l.b16 %v1078
        %v1284 = vunpack.c.h.b16 %v1078
        %v1285 = vunpack.c.l.b16 %v1079
        %v1286 = vunpack.c.h.b16 %v1079
        %v1287 = vunpack.c.l.b16 %v1080
        %v1288 = vunpack.c.h.b16 %v1080
        %v1289 = vunpack.c.l.b16 %v1081
        %v1290 = vunpack.c.h.b16 %v1081
        %v1291 = vunpack.c.l.b16 %v1082
        %v1292 = vunpack.c.h.b16 %v1082
        %v1293 = vunpack.c.l.b16 %v1083
        %v1294 = vunpack.c.h.b16 %v1083
        %v1295 = vunpack.c.l.b16 %v1084
        %v1296 = vunpack.c.h.b16 %v1084
        %v1297 = vunpack.c.l.b16 %v1085
        %v1298 = vunpack.c.h.b16 %v1085
        %v1299 = vunpack.c.l.b16 %v1086
        %v1300 = vunpack.c.h.b16 %v1086
        %v1301 = vunpack.c.l.b16 %v1087
        %v1302 = vunpack.c.h.b16 %v1087
        %v1303 = vpack.c.b16 %v1179, %v1175
        %v1304 = vpack.c.b16 %v1180, %v1176
        %v1305 = vpack.c.b16 %v1181, %v1177
        %v1306 = vpack.c.b16 %v1182, %v1178
        %v1307 = vpack.c.b16 %v1187, %v1183
        %v1308 = vpack.c.b16 %v1188, %v1184
        %v1309 = vpack.c.b16 %v1189, %v1185
        %v1310 = vpack.c.b16 %v1190, %v1186
        %v1311 = vpack.c.b16 %v1195, %v1191
        %v1312 = vpack.c.b16 %v1196, %v1192
        %v1313 = vpack.c.b16 %v1197, %v1193
        %v1314 = vpack.c.b16 %v1198, %v1194
        %v1315 = vpack.c.b16 %v1203, %v1199
        %v1316 = vpack.c.b16 %v1204, %v1200
        %v1317 = vpack.c.b16 %v1205, %v1201
        %v1318 = vpack.c.b16 %v1206, %v1202
        %v1319 = vpack.c.b16 %v1211, %v1207
        %v1320 = vpack.c.b16 %v1212, %v1208
        %v1321 = vpack.c.b16 %v1213, %v1209
        %v1322 = vpack.c.b16 %v1214, %v1210
        %v1323 = vpack.c.b16 %v1219, %v1215
        %v1324 = vpack.c.b16 %v1220, %v1216
        %v1325 = vpack.c.b16 %v1221, %v1217
        %v1326 = vpack.c.b16 %v1222, %v1218
        %v1327 = vpack.c.b16 %v1227, %v1223
        %v1328 = vpack.c.b16 %v1228, %v1224
        %v1329 = vpack.c.b16 %v1229, %v1225
        %v1330 = vpack.c.b16 %v1230, %v1226
        %v1331 = vpack.c.b16 %v1235, %v1231
        %v1332 = vpack.c.b16 %v1236, %v1232
        %v1333 = vpack.c.b16 %v1237, %v1233
        %v1334 = vpack.c.b16 %v1238, %v1234
        %v1335 = vpack.c.b16 %v1243, %v1239
        %v1336 = vpack.c.b16 %v1244, %v1240
        %v1337 = vpack.c.b16 %v1245, %v1241
        %v1338 = vpack.c.b16 %v1246, %v1242
        %v1339 = vpack.c.b16 %v1251, %v1247
        %v1340 = vpack.c.b16 %v1252, %v1248
        %v1341 = vpack.c.b16 %v1253, %v1249
        %v1342 = vpack.c.b16 %v1254, %v1250
        %v1343 = vpack.c.b16 %v1259, %v1255
        %v1344 = vpack.c.b16 %v1260, %v1256
        %v1345 = vpack.c.b16 %v1261, %v1257
        %v1346 = vpack.c.b16 %v1262, %v1258
        %v1347 = vpack.c.b16 %v1267, %v1263
        %v1348 = vpack.c.b16 %v1268, %v1264
        %v1349 = vpack.c.b16 %v1269, %v1265
        %v1350 = vpack.c.b16 %v1270, %v1266
        %v1351 = vpack.c.b16 %v1275, %v1271
        %v1352 = vpack.c.b16 %v1276, %v1272
        %v1353 = vpack.c.b16 %v1277, %v1273
        %v1354 = vpack.c.b16 %v1278, %v1274
        %v1355 = vpack.c.b16 %v1283, %v1279
        %v1356 = vpack.c.b16 %v1284, %v1280
        %v1357 = vpack.c.b16 %v1285, %v1281
        %v1358 = vpack.c.b16 %v1286, %v1282
        %v1359 = vpack.c.b16 %v1291, %v1287
        %v1360 = vpack.c.b16 %v1292, %v1288
        %v1361 = vpack.c.b16 %v1293, %v1289
        %v1362 = vpack.c.b16 %v1294, %v1290
        %v1363 = vpack.c.b16 %v1299, %v1295
        %v1364 = vpack.c.b16 %v1300, %v1296
        %v1365 = vpack.c.b16 %v1301, %v1297
        %v1366 = vpack.c.b16 %v1302, %v1298
        %1431 = vmatprep.subr.bf16.mxu0 %v1332
        %1432 = vmatpush1.bf16.msra.mxu0 %v1331
        %1433 = vmatprep.subr.bf16.mxu0 %v1328
        %1434 = vmatpush1.bf16.msra.mxu0 %v1327
        %1435 = vmatprep.subr.bf16.mxu0 %v1324
        %1436 = vmatpush1.bf16.msra.mxu0 %v1323
        %1437 = vmatprep.subr.bf16.mxu0 %v1320
        %1438 = vmatpush1.bf16.msra.mxu0 %v1319
        %1439 = vmatprep.subr.bf16.mxu0 %v1316
        %1440 = vmatpush1.bf16.msra.mxu0 %v1315
        %1441 = vmatprep.subr.bf16.mxu0 %v1312
        %1442 = vmatpush1.bf16.msra.mxu0 %v1311
        %1443 = vmatprep.subr.bf16.mxu0 %v1308
        %1444 = vmatpush1.bf16.msra.mxu0 %v1307
        %1445 = vmatprep.subr.bf16.mxu0 %v1304
        %1446 = vmatpush1.bf16.msra.mxu0 %v1303
        %1447 = vmatprep.subr.bf16.mxu0 %v1364
        %1448 = vmatpush2.bf16.msra.mxu0 %v1363
        %1449 = vmatprep.subr.bf16.mxu0 %v1360
        %1450 = vmatpush2.bf16.msra.mxu0 %v1359
        %1451 = vmatprep.subr.bf16.mxu0 %v1356
        %1452 = vmatpush2.bf16.msra.mxu0 %v1355
        %1453 = vmatprep.subr.bf16.mxu0 %v1352
        %1454 = vmatpush2.bf16.msra.mxu0 %v1351
        %1455 = vmatprep.subr.bf16.mxu0 %v1348
        %1456 = vmatpush2.bf16.msra.mxu0 %v1347
        %1457 = vmatprep.subr.bf16.mxu0 %v1344
        %1458 = vmatpush2.bf16.msra.mxu0 %v1343
        %1459 = vmatprep.subr.bf16.mxu0 %v1340
        %1460 = vmatpush2.bf16.msra.mxu0 %v1339
        %1461 = vmatprep.subr.bf16.mxu0 %v1336
        %1462 = vmatpush2.bf16.msra.mxu0 %v1335
        %1463 = vmatprep.mubr.bf16.mxu0 %v1022
        %1464 = vmatmul.mubr.bf16.gmra.mxu0 %v1021
        %v1465 = vpop.f32.mrf.mxu0
        %v1466 = vadd.f32 %v1094, %v1465
        %v1467 = vpop.f32.mrf.mxu0
        %v1468 = vadd.f32 %v1098, %v1467
        %v1469 = vpop.f32.mrf.mxu0
        %v1470 = vpop.f32.mrf.mxu0
        %1471 = vdwg.mxu0
        %1472 = vmatprep.subr.bf16.mxu0 %v1334
        %1473 = vmatpush1.bf16.msra.mxu0 %v1333
        %1474 = vmatprep.subr.bf16.mxu0 %v1330
        %1475 = vmatpush1.bf16.msra.mxu0 %v1329
        %1476 = vmatprep.subr.bf16.mxu0 %v1326
        %1477 = vmatpush1.bf16.msra.mxu0 %v1325
        %1478 = vmatprep.subr.bf16.mxu0 %v1322
        %1479 = vmatpush1.bf16.msra.mxu0 %v1321
        %1480 = vmatprep.subr.bf16.mxu0 %v1318
        %1481 = vmatpush1.bf16.msra.mxu0 %v1317
        %1482 = vmatprep.subr.bf16.mxu0 %v1314
        %1483 = vmatpush1.bf16.msra.mxu0 %v1313
        %1484 = vmatprep.subr.bf16.mxu0 %v1310
        %1485 = vmatpush1.bf16.msra.mxu0 %v1309
        %1486 = vmatprep.subr.bf16.mxu0 %v1306
        %1487 = vmatpush1.bf16.msra.mxu0 %v1305
        %1488 = vmatprep.subr.bf16.mxu0 %v1366
        %1489 = vmatpush2.bf16.msra.mxu0 %v1365
        %1490 = vmatprep.subr.bf16.mxu0 %v1362
        %1491 = vmatpush2.bf16.msra.mxu0 %v1361
        %1492 = vmatprep.subr.bf16.mxu0 %v1358
        %1493 = vmatpush2.bf16.msra.mxu0 %v1357
        %1494 = vmatprep.subr.bf16.mxu0 %v1354
        %1495 = vmatpush2.bf16.msra.mxu0 %v1353
        %1496 = vmatprep.subr.bf16.mxu0 %v1350
        %1497 = vmatpush2.bf16.msra.mxu0 %v1349
        %1498 = vmatprep.subr.bf16.mxu0 %v1346
        %1499 = vmatpush2.bf16.msra.mxu0 %v1345
        %1500 = vmatprep.subr.bf16.mxu0 %v1342
        %1501 = vmatpush2.bf16.msra.mxu0 %v1341
        %1502 = vmatprep.subr.bf16.mxu0 %v1338
        %1503 = vmatpush2.bf16.msra.mxu0 %v1337
        %1504 = vmatprep.mubr.bf16.mxu0 %v1022
        %1505 = vmatmul.mubr.bf16.gmra.mxu0 %v1021
        %v1506 = vpop.f32.mrf.mxu0
        %v1507 = vadd.f32 %v1102, %v1506
        %v1508 = vpop.f32.mrf.mxu0
        %v1509 = vadd.f32 %v1106, %v1508
        %v1510 = vpop.f32.mrf.mxu0
        %v1511 = vpop.f32.mrf.mxu0
        %1512 = vdwg.mxu0
        %v1513 = vxor.u32 %v1466, 2147483648
        %v1514 = vmul.f32 %v1513, 1.442695
        %v1515 = vpow.pop %v1514
        %v1516 = vadd.f32 %v1515, 1.0
        %v1517 = vrcp.pop %v1516
        %v1518 = vmul.f32 1.0, %v1517
        %v1519 = vxor.u32 %v1468, 2147483648
        %v1520 = vmul.f32 %v1519, 1.442695
        %v1521 = vpow.pop %v1520
        %v1522 = vadd.f32 %v1521, 1.0
        %v1523 = vrcp.pop %v1522
        %v1524 = vmul.f32 1.0, %v1523
        %v1525 = vmul.f32 %v1518, %v1509
        %v1526 = vadd.f32 %v1507, %v1525
        %v1527 = vtanh.pop %v1526
        %v1528 = vsub.f32 1.0, %v1524
        %v1529 = vmul.f32 %v1528, %v1527
        %v1530 = vmul.f32 %v1524, %v1020
        %v1531 = vadd.f32 %v1529, %v1530
        %1532 = vst [vmem:[%s1019] sm:$0xff] %v1531
        %v1533 = vpack.c.bf16 %v1531, %v1531
        %v1534 = vld [vmem:[#allocation13] sm:$0xf]
        %v1535 = vld [vmem:[#allocation13 + $0x4] sm:$0xf]
        %v1536 = vld [vmem:[#allocation13 + $0x8] sm:$0xf]
        %v1537 = vld [vmem:[#allocation13 + $0xc] sm:$0xf]
        %v1538 = vld [vmem:[#allocation13 + $0x10] sm:$0xf]
        %v1539 = vld [vmem:[#allocation13 + $0x14] sm:$0xf]
        %v1540 = vld [vmem:[#allocation13 + $0x18] sm:$0xf]
        %v1541 = vld [vmem:[#allocation13 + $0x1c] sm:$0xf]
        %v1542 = vld [vmem:[#allocation13 + $0x20] sm:$0xf]
        %v1543 = vld [vmem:[#allocation13 + $0x24] sm:$0xf]
        %v1544 = vld [vmem:[#allocation13 + $0x28] sm:$0xf]
        %v1545 = vld [vmem:[#allocation13 + $0x2c] sm:$0xf]
        %v1546 = vld [vmem:[#allocation13 + $0x30] sm:$0xf]
        %v1547 = vld [vmem:[#allocation13 + $0x34] sm:$0xf]
        %v1548 = vld [vmem:[#allocation13 + $0x38] sm:$0xf]
        %v1549 = vld [vmem:[#allocation13 + $0x3c] sm:$0xf]
        %v1550 = vld [vmem:[%s6] sm:$0x1]
        %v1552 = vlaneseq
        %v1553 = vshrl.u32 %v1552, 7
        %v1554 = vsub.s32 0, %v1553
        %v1555 = vrot.slane %v1550, %v1554
        %v1573 = vunpack.c.l.b16 %v1534
        %v1574 = vunpack.c.l.b16 %v1535
        %v1575 = vunpack.c.l.b16 %v1536
        %v1576 = vunpack.c.l.b16 %v1537
        %v1577 = vunpack.c.l.b16 %v1538
        %v1578 = vunpack.c.l.b16 %v1539
        %v1579 = vunpack.c.l.b16 %v1540
        %v1580 = vunpack.c.l.b16 %v1541
        %v1581 = vunpack.c.l.b16 %v1542
        %v1582 = vunpack.c.l.b16 %v1543
        %v1583 = vunpack.c.l.b16 %v1544
        %v1584 = vunpack.c.l.b16 %v1545
        %v1585 = vunpack.c.l.b16 %v1546
        %v1586 = vunpack.c.l.b16 %v1547
        %v1587 = vunpack.c.l.b16 %v1548
        %v1588 = vunpack.c.l.b16 %v1549
        %v1589 = vpack.c.b16 %v1574, %v1573
        %v1590 = vpack.c.b16 %v1576, %v1575
        %v1591 = vpack.c.b16 %v1578, %v1577
        %v1592 = vpack.c.b16 %v1580, %v1579
        %v1593 = vpack.c.b16 %v1582, %v1581
        %v1594 = vpack.c.b16 %v1584, %v1583
        %v1595 = vpack.c.b16 %v1586, %v1585
        %v1596 = vpack.c.b16 %v1588, %v1587
        %1605 = vmatprep.subr.bf16.mxu0 0
        %1606 = vmatpush1.bf16.msra.mxu0 %v1596
        %1607 = vmatprep.subr.bf16.mxu0 0
        %1608 = vmatpush1.bf16.msra.mxu0 %v1595
        %1609 = vmatprep.subr.bf16.mxu0 0
        %1610 = vmatpush1.bf16.msra.mxu0 %v1594
        %1611 = vmatprep.subr.bf16.mxu0 0
        %1612 = vmatpush1.bf16.msra.mxu0 %v1593
        %1613 = vmatprep.subr.bf16.mxu0 0
        %1614 = vmatpush1.bf16.msra.mxu0 %v1592
        %1615 = vmatprep.subr.bf16.mxu0 0
        %1616 = vmatpush1.bf16.msra.mxu0 %v1591
        %1617 = vmatprep.subr.bf16.mxu0 0
        %1618 = vmatpush1.bf16.msra.mxu0 %v1590
        %1619 = vmatprep.subr.bf16.mxu0 0
        %1620 = vmatpush1.bf16.msra.mxu0 %v1589
        %1621 = vmatprep.subr.bf16.mxu0 0
        %1622 = vmatpush2.bf16.msra.mxu0 0
        %1623 = vmatprep.subr.bf16.mxu0 0
        %1624 = vmatpush2.bf16.msra.mxu0 0
        %1625 = vmatprep.subr.bf16.mxu0 0
        %1626 = vmatpush2.bf16.msra.mxu0 0
        %1627 = vmatprep.subr.bf16.mxu0 0
        %1628 = vmatpush2.bf16.msra.mxu0 0
        %1629 = vmatprep.subr.bf16.mxu0 0
        %1630 = vmatpush2.bf16.msra.mxu0 0
        %1631 = vmatprep.subr.bf16.mxu0 0
        %1632 = vmatpush2.bf16.msra.mxu0 0
        %1633 = vmatprep.subr.bf16.mxu0 0
        %1634 = vmatpush2.bf16.msra.mxu0 0
        %1635 = vmatprep.subr.bf16.mxu0 0
        %1636 = vmatpush2.bf16.msra.mxu0 0
        %1637 = vmatprep.mubr.bf16.mxu0 0
        %1638 = vmatmul.mubr.bf16.gmra.mxu0 %v1533
        %v1639 = vpop.f32.mrf.mxu0
        %v1640 = vadd.f32 %v1555, %v1639
        %v1641 = vpop.f32.mrf.mxu0
        %v1642 = vpop.f32.mrf.mxu0
        %v1643 = vpop.f32.mrf.mxu0
        %1644 = vdwg.mxu0
        %1645 = vst [vmem:[%s331] sm:$0xff] %v1640
        %p1646 = scmp.eq.s32.totalorder %s31, 7
        // Predicated region
        $region69: #{_decode_call.1} parent=43 // pred_check
          %p1647 = pneg %p1646
        $region70: #{_decode_call.1} parent=43 // pred_check_branch
          %1649 = sbr.rel (%p1647) target = $region72
        $region71: #{_decode_call.1} parent=43 // pred_region
          %v1650 = vld [vmem:[#allocation2] sm:$0xff]
          %v1651 = vld [vmem:[#allocation2 + $0x8] sm:$0xff]
          %1652 = vst [vmem:[#allocation15] sm:$0xff] %v1650
          %1653 = vst [vmem:[#allocation15 + $0x8] sm:$0xff] %v1651
        $region72: #{_decode_call.1} parent=43 // pred_fallthru
          _
        %s1654 = sand.u32 %s165, 1
        %s1655 = scalar_lea.sflag [#allocation7], %s1654
        %s1656 = sand.u32 %s165, 1
        %s1657 = smul.addr %s1656, 8
        %s1658 = scalar_lea.vmem [#allocation14], %s1657
        // Predicated region
        $region73: #{_decode_call.1} parent=43 // pred_check
          %p1659 = pneg %p175
        $region74: #{_decode_call.1} parent=43 // pred_check_branch
          %1661 = sbr.rel (%p1659) target = $region76
        $region75: #{_decode_call.1} parent=43 // pred_region
          %s1663 = ssub.s32 128, 128
          %1664 = vsyncadd %s1655, %s1663
          %s1665 = smul.addr %s31, 128
          %s1666 = scalar_lea.hbm %s7, %s1665
          %s1668 = sshll.u32 %s1658, 4
          %s1669 = int_to_ptr.vmem [resolvable:$true] %s1668
          %1671 = dma.vmem_to_hbm [thread:$0]  %s1669, 128, %s1666, %s1655
        $region76: #{_decode_call.1} parent=43 // pred_fallthru
          _
        // Predicated region
        $region77: #{_decode_call.1} parent=43 // pred_check
          %p1672 = pneg %p196
        $region78: #{_decode_call.1} parent=43 // pred_check_branch
          %1674 = sbr.rel (%p1672) target = $region80
        $region79: #{_decode_call.1} parent=43 // pred_region
          %s1676 = ssub.s32 256, 256
          %1677 = vsyncadd [#allocation16], %s1676
          %s1678 = sshll.u32 [#allocation15], 4
          %s1679 = int_to_ptr.vmem [resolvable:$true] %s1678
          %1684 = dma.vmem_to_hbm [thread:$0]  %s1679, 256, %s8, [#allocation16], 128, 128, 8
        $region80: #{_decode_call.1} parent=43 // pred_fallthru
          _
        // Predicated region
        $region81: #{_decode_call.1} parent=43 // pred_check
          %p1685 = pneg %p196
        $region82: #{_decode_call.1} parent=43 // pred_check_branch
          %1687 = sbr.rel (%p1685) target = $region84
        $region83: #{_decode_call.1} parent=43 // pred_region
          %1688 = dma.done [#allocation16], 256
        $region84: #{_decode_call.1} parent=43 // pred_fallthru
          _
      $region44: #{_decode_call.1} parent=5 // pred_fallthru
        _
      %p1689 = scmp.le.s32.totalorder 2, %s26
      // Predicated region
      $region85: #{_decode_call.1} parent=5 // pred_check
        %p1690 = pneg %p1689
      $region86: #{_decode_call.1} parent=5 // pred_check_branch
        %1692 = sbr.rel (%p1690) target = $region88
      $region87: #{_decode_call.1} parent=5 // pred_region
        %s1693 = ssub.s32 %s26, 2
        // Predicated region
        $region89: #{_decode_call.1} parent=87 // pred_check
          %p1694 = pneg %p181
        $region90: #{_decode_call.1} parent=87 // pred_check_branch
          %1696 = sbr.rel (%p1694) target = $region92
        $region91: #{_decode_call.1} parent=87 // pred_region
          %s1697 = sand.u32 %s166, 1
          %s1698 = scalar_lea.sflag [#allocation7], %s1697
          %s1699 = sand.u32 %s166, 1
          %s1700 = smul.addr %s1699, 8
          %s1701 = scalar_lea.vmem [#allocation14], %s1700
          %1702 = dma.done %s1698, 128
        $region92: #{_decode_call.1} parent=87 // pred_fallthru
          _
      $region88: #{_decode_call.1} parent=5 // pred_fallthru
        _
    $region6: #{_decode_call.1} parent=1 // loop_footer
      %s30 = sadd.s32 1, %s26
    $region7: #{_decode_call.1} parent=1 // loop_footer_branch
      %25 = sbr.rel target = $region3
    $region8: #{_decode_call.1} parent=1 // loop_exit
      _
    %1703 = vsyncpa [#allocation6], 1
    %s1704 = scalar_lea.sflag [#allocation6], 1
    %1705 = vsyncpa %s1704, 1
    %1706 = vsyncpa [#allocation9], 1
    %1707 = vsyncpa [#allocation12], 1
    %1708 = vsyncpa [#allocation7], 1
    %s1709 = scalar_lea.sflag [#allocation7], 1
    %1710 = vsyncpa %s1709, 1
    %1711 = vsyncpa [#allocation16], 1

</llo_original>
